<compile_context>
chip_gen: v7x
topology: tpu7x:2x2x1
jax: 0.10.0
libtpu: 0.0.40
codegen_flags: <defaults>
</compile_context>

<pallas_src>
import functools

import jax
import jax.numpy as jnp
from jax import lax
from jax.experimental import pallas as pl
from jax.experimental.pallas import tpu as pltpu


# ----------------------------------------------------------------------------- #
# helpers
# ----------------------------------------------------------------------------- #
def _round_up(n, m):
    return ((n + m - 1) // m) * m


def _tile_and_pad(n, max_tile=2048):
    """Pad a lane dimension and pick a lane tile (multiple of 128, >=2 grid steps)."""
    npad = _round_up(max(n, 256), 256)
    if npad <= 2 * max_tile:
        tile = npad // 2                       # exactly 2 grid steps (keeps 2 v7x TCs busy)
    else:
        tile = max_tile
        npad = _round_up(npad, tile)           # a handful of big lane-dense steps
    return npad, tile


def _pad_lanes(x, n):
    pad = n - x.shape[-1]
    if pad:
        x = jnp.pad(x, [(0, 0)] * (x.ndim - 1) + [(0, pad)])
    return x


# ----------------------------------------------------------------------------- #
# Kernel 1: LBS skinning (MXU) + per-vertex posing, transposed [C, N] layout
#   wt:  [KP, V_tile]   augmented skinning weights (row K is all-ones -> carries transl)
#   at:  [16, KP]       augmented flattened joint transforms (col K is the translation)
#   vdt: [3,  V_tile]   displaced template vertices
#   out: [3,  V_tile]   posed vertices
# ----------------------------------------------------------------------------- #
def _lbs_pose_kernel(wt_ref, at_ref, vdt_ref, vpt_ref):
    # T^T[16, V_tile] = A_aug^T[16, KP] @ W_aug^T[KP, V_tile]   (MXU, V on the lane/N axis)
    Tt = jnp.dot(at_ref[...], wt_ref[...], preferred_element_type=jnp.float32)

    vd = vdt_ref[...]
    vx, vy, vz = vd[0:1], vd[1:2], vd[2:3]

    # rows 0..11 of the flattened 4x4: [R | t]; translation (incl. global transl) in 3/7/11
    px = Tt[0:1] * vx + Tt[1:2] * vy + Tt[2:3] * vz + Tt[3:4]
    py = Tt[4:5] * vx + Tt[5:6] * vy + Tt[6:7] * vz + Tt[7:8]
    pz = Tt[8:9] * vx + Tt[9:10] * vy + Tt[10:11] * vz + Tt[11:12]

    # single wide, lane-dense store
    vpt_ref[...] = jnp.concatenate([px, py, pz], axis=0)


def lbs_pose_pallas(wt, at, vdt, *, tile):
    KP, Vpad = wt.shape
    return pl.pallas_call(
        _lbs_pose_kernel,
        out_shape=jax.ShapeDtypeStruct((3, Vpad), jnp.float32),
        grid=(Vpad // tile,),
        in_specs=[
            pl.BlockSpec((KP, tile), lambda i: (0, i)),
            pl.BlockSpec((16, KP), lambda i: (0, 0)),
            pl.BlockSpec((3, tile), lambda i: (0, i)),
        ],
        out_specs=pl.BlockSpec((3, tile), lambda i: (0, i)),
        compiler_params=pltpu.CompilerParams(dimension_semantics=("parallel",)),
    )(wt, at, vdt)


# ----------------------------------------------------------------------------- #
# Kernel 2: per-face geometry, transposed [C, N] layout, single packed output slab
#   fvt: [9, F_tile]  rows 0-2: v0.xyz, 3-5: v1.xyz, 6-8: v2.xyz  (posed face vertices)
#   rot: [2, F_tile]  complex rotation params
#   scl: [2, F_tile]  log scale params
#   op : [1, F_tile]  opacity logits
#   out: [16, F_tile] rows 0-2 centroid | 3-5 normal | 6-9 quat | 10-12 scales | 13 opacity
# ----------------------------------------------------------------------------- #
def _cross(ax, ay, az, bx, by, bz):
    return ay * bz - az * by, az * bx - ax * bz, ax * by - ay * bx


def _face_geom_kernel(fvt_ref, rot_ref, scl_ref, op_ref, out_ref):
    fv = fvt_ref[...]
    v0x, v0y, v0z = fv[0:1], fv[1:2], fv[2:3]
    v1x, v1y, v1z = fv[3:4], fv[4:5], fv[5:6]
    v2x, v2y, v2z = fv[6:7], fv[7:8], fv[8:9]

    third = 1.0 / 3.0
    cx = (v0x + v1x + v2x) * third
    cy = (v0y + v1y + v2y) * third
    cz = (v0z + v1z + v2z) * third

    # pytorch3d face normal: normalize(cross(v1-v0, v2-v0)), eps=1e-6 on the norm.
    # (single normalization; only differs from the double-normalize for zero-area faces)
    e1x, e1y, e1z = v1x - v0x, v1y - v0y, v1z - v0z
    e2x, e2y, e2z = v2x - v0x, v2y - v0y, v2z - v0z
    nx, ny, nz = _cross(e1x, e1y, e1z, e2x, e2y, e2z)
    inv_n = lax.rsqrt(jnp.maximum(nx * nx + ny * ny + nz * nz, 1e-12))
    r0x, r0y, r0z = nx * inv_n, ny * inv_n, nz * inv_n            # face normal == R_0

    # base_R_1 = normalize(v0 - v1)
    b1x, b1y, b1z = v0x - v1x, v0y - v1y, v0z - v1z
    inv1 = lax.rsqrt(jnp.maximum(b1x * b1x + b1y * b1y + b1z * b1z, 1e-24))
    b1x, b1y, b1z = b1x * inv1, b1y * inv1, b1z * inv1

    # base_R_2 = normalize(cross(R_0, base_R_1))
    b2x, b2y, b2z = _cross(r0x, r0y, r0z, b1x, b1y, b1z)
    inv2 = lax.rsqrt(jnp.maximum(b2x * b2x + b2y * b2y + b2z * b2z, 1e-24))
    b2x, b2y, b2z = b2x * inv2, b2y * inv2, b2z * inv2

    # normalized complex rotation per face
    rot = rot_ref[...]
    c0, c1 = rot[0:1], rot[1:2]
    invc = lax.rsqrt(jnp.maximum(c0 * c0 + c1 * c1, 1e-24))
    c0, c1 = c0 * invc, c1 * invc

    r1x, r1y, r1z = c0 * b1x + c1 * b2x, c0 * b1y + c1 * b2y, c0 * b1z + c1 * b2z
    r2x, r2y, r2z = -c1 * b1x + c0 * b2x, -c1 * b1y + c0 * b2y, -c1 * b1z + c0 * b2z

    # rotation matrix with columns [R_0, R_1, R_2]
    m00, m01, m02 = r0x, r1x, r2x
    m10, m11, m12 = r0y, r1y, r2y
    m20, m21, m22 = r0z, r1z, r2z

    def sqrtp(x):
        return jnp.sqrt(jnp.maximum(x, 0.0))

    # pytorch3d matrix_to_quaternion (ties resolve to the first branch -> at worst a sign
    # flip of an equivalent quaternion in exactly-degenerate cases)
    qa0 = sqrtp(1.0 + m00 + m11 + m22)
    qa1 = sqrtp(1.0 + m00 - m11 - m22)
    qa2 = sqrtp(1.0 - m00 + m11 - m22)
    qa3 = sqrtp(1.0 - m00 - m11 + m22)

    # approx reciprocal is exactly cancelled by the final normalization (uniform scale)
    d0 = 0.5 * pl.reciprocal(jnp.maximum(qa0, 0.1), approx=True)
    d1 = 0.5 * pl.reciprocal(jnp.maximum(qa1, 0.1), approx=True)
    d2 = 0.5 * pl.reciprocal(jnp.maximum(qa2, 0.1), approx=True)
    d3 = 0.5 * pl.reciprocal(jnp.maximum(qa3, 0.1), approx=True)

    cands = (
        (qa0 * qa0 * d0, (m21 - m12) * d0, (m02 - m20) * d0, (m10 - m01) * d0),
        ((m21 - m12) * d1, qa1 * qa1 * d1, (m10 + m01) * d1, (m02 + m20) * d1),
        ((m02 - m20) * d2, (m10 + m01) * d2, qa2 * qa2 * d2, (m12 + m21) * d2),
        ((m10 - m01) * d3, (m20 + m02) * d3, (m21 + m12) * d3, qa3 * qa3 * d3),
    )

    qmax = jnp.maximum(jnp.maximum(qa0, qa1), jnp.maximum(qa2, qa3))
    s0 = qa0 >= qmax
    s1 = jnp.logical_and(jnp.logical_not(s0), qa1 >= qmax)
    s2 = jnp.logical_and(jnp.logical_not(jnp.logical_or(s0, s1)), qa2 >= qmax)

    def pick(i):
        return jnp.where(s0, cands[0][i],
               jnp.where(s1, cands[1][i],
               jnp.where(s2, cands[2][i], cands[3][i])))

    qw, qx, qy, qz = pick(0), pick(1), pick(2), pick(3)
    invq = lax.rsqrt(jnp.maximum(qw * qw + qx * qx + qy * qy + qz * qz, 1e-24))
    qw, qx, qy, qz = qw * invq, qx * invq, qy * invq, qz * invq

    # scales: [surface_mesh_thickness, exp(scale params)] ; opacity: sigmoid (EUP exp + rcp)
    thick = jnp.full_like(cx, 1e-3)
    plane_scales = jnp.exp(scl_ref[...])                                   # (2, F_tile)
    opac = pl.reciprocal(1.0 + jnp.exp(-op_ref[...]), approx=True)         # (1, F_tile)
    pad_rows = jnp.zeros_like(rot)                                         # (2, F_tile)

    # one lane-dense packed store (v5e has a single vector-store slot)
    out_ref[...] = jnp.concatenate(
        [cx, cy, cz, r0x, r0y, r0z, qw, qx, qy, qz, thick, plane_scales, opac, pad_rows],
        axis=0)


def face_geometry_pallas(fvt, rott, sclt, opt, *, tile):
    Fpad = fvt.shape[1]
    return pl.pallas_call(
        _face_geom_kernel,
        out_shape=jax.ShapeDtypeStruct((16, Fpad), jnp.float32),
        grid=(Fpad // tile,),
        in_specs=[
            pl.BlockSpec((9, tile), lambda i: (0, i)),
            pl.BlockSpec((2, tile), lambda i: (0, i)),
            pl.BlockSpec((2, tile), lambda i: (0, i)),
            pl.BlockSpec((1, tile), lambda i: (0, i)),
        ],
        out_specs=pl.BlockSpec((16, tile), lambda i: (0, i)),
        compiler_params=pltpu.CompilerParams(dimension_semantics=("parallel",)),
    )(fvt, rott, sclt, opt)


# ----------------------------------------------------------------------------- #
# Plain-JAX glue: Rodrigues + kinematic chain (24 tiny 4x4 matmuls at trace time)
# ----------------------------------------------------------------------------- #
def batch_rodrigues(rot_vecs):
    angle = jnp.linalg.norm(rot_vecs + 1e-8, axis=1, keepdims=True)        # [K,1]
    rot_dir = rot_vecs / angle
    cos = jnp.cos(angle)[..., None]
    sin = jnp.sin(angle)[..., None]
    rx, ry, rz = rot_dir[:, 0], rot_dir[:, 1], rot_dir[:, 2]
    zeros = jnp.zeros_like(rx)
    Kmat = jnp.stack([zeros, -rz, ry, rz, zeros, -rx, -ry, rx, zeros],
                     axis=1).reshape(-1, 3, 3)
    eye = jnp.eye(3, dtype=rot_vecs.dtype)[None]
    return eye + sin * Kmat + (1.0 - cos) * jnp.matmul(Kmat, Kmat)


def batch_rigid_transform(rot_mats, joints, parents):
    K = joints.shape[0]
    parent_idx = jnp.array(parents[1:], dtype=jnp.int32)
    rel = joints.at[1:].add(-joints[parent_idx])

    def make_T(R, t):
        top = jnp.concatenate([R, t[:, None]], axis=1)                     # [3,4]
        bot = jnp.array([[0.0, 0.0, 0.0, 1.0]], dtype=R.dtype)
        return jnp.concatenate([top, bot], axis=0)                         # [4,4]

    T_local = [make_T(rot_mats[i], rel[i]) for i in range(K)]
    chain = [T_local[0]]
    for i in range(1, K):
        chain.append(chain[parents[i]] @ T_local[i])
    transforms = jnp.stack(chain)                                          # [K,4,4]

    joints_h = jnp.concatenate([joints, jnp.zeros((K, 1), joints.dtype)], axis=1)[..., None]
    tj = transforms @ joints_h
    rel_transforms = transforms - jnp.pad(tj, ((0, 0), (0, 0), (3, 0)))
    return rel_transforms                                                  # [K,4,4]


# ----------------------------------------------------------------------------- #
# Forward pass (mirrors SMPLModel.forward)
# ----------------------------------------------------------------------------- #
@functools.partial(jax.jit, static_argnames=("parents",))
def smpl_forward(params, parents, body_pose, global_orient, transl):
    V = params["weights"].shape[0]
    K = params["J"].shape[1]
    F = params["faces"].shape[1]

    full_body_pose = jnp.concatenate([global_orient[:, None, :], body_pose], axis=1)

    # shs branch (use_point_color=True, max_sh_degree=0 -> shs_rest is empty)
    shs = params["shs_dc"]                                                 # [F,1,3]

    # v_displaced (use_point_displacement=True)
    v_disp = (params["v_template"] + params["displacements"])[0]           # [V,3]

    # LBS glue: axis-angle -> rotations -> kinematic chain
    rot_mats = batch_rodrigues(full_body_pose[0])                          # [K,3,3]
    A = batch_rigid_transform(rot_mats, params["J"][0], parents)           # [K,4,4]

    Vpad, v_tile = _tile_and_pad(V)
    Fpad, f_tile = _tile_and_pad(F)

    # augmented, transposed skinning operands (contraction dim padded to a multiple of 8;
    # the extra all-ones weight row carries the global translation through the matmul)
    KP = _round_up(K + 1, 8)
    wt = jnp.zeros((KP, Vpad), jnp.float32)
    wt = wt.at[:K, :V].set(params["weights"].T)
    wt = wt.at[K, :V].set(1.0)

    at = jnp.zeros((16, KP), jnp.float32)
    at = at.at[:, :K].set(A.reshape(K, 16).T)
    at = at.at[3, K].set(transl[0, 0])
    at = at.at[7, K].set(transl[0, 1])
    at = at.at[11, K].set(transl[0, 2])

    vdt = _pad_lanes(v_disp.T, Vpad)                                       # [3, Vpad]

    # Pallas kernel 1: skinning matmul + per-vertex rigid transform (+ transl)
    vpt = lbs_pose_pallas(wt, at, vdt, tile=v_tile)                        # [3, Vpad]
    verts_posed = vpt[:, :V].T                                             # [V, 3]

    # TODO(synk): the data-dependent gather of posed face vertices stays in plain XLA;
    # fusing it would require an in-kernel sublane/lane gather of the whole mesh in VMEM.
    faces = params["faces"][0]                                             # [F,3]
    fvt = jnp.concatenate(
        [jnp.take(vpt, faces[:, c], axis=1) for c in range(3)], axis=0)    # [9, F]
    fvt = _pad_lanes(fvt, Fpad)

    rott = _pad_lanes(params["rotations"].T, Fpad)                         # [2, Fpad]
    sclt = _pad_lanes(params["scales"].T, Fpad)                            # [2, Fpad]
    opt = _pad_lanes(params["opacity"].T, Fpad)                            # [1, Fpad]

    # Pallas kernel 2: per-face geometry (packed output slab)
    packed = face_geometry_pallas(fvt, rott, sclt, opt, tile=f_tile)[:, :F]  # [16, F]

    centroids = packed[0:3].T                                              # [F,3]
    faces_normals = packed[3:6].T                                          # [F,3]
    quaternions = packed[6:10].T                                           # [F,4]
    scales_out = packed[10:13].T                                           # [F,3]
    opac = packed[13:14].T                                                 # [F,1]

    # identity per-face 3x4 "transforms" output
    eye34 = jnp.concatenate([jnp.eye(3, dtype=jnp.float32),
                             jnp.zeros((3, 1), jnp.float32)], axis=1)
    transforms = jnp.broadcast_to(eye34, (F, 3, 4))

    return (centroids,        # f_displaced        [F,3]
            opac,             # sigmoid(opacity)   [F,1]
            scales_out,       # scales             [F,3]
            quaternions,      # quaternions        [F,4]
            shs,              # shs                [F,1,3]
            transforms,       # transforms         [F,3,4]
            verts_posed,      # posed vertices     [V,3]
            faces_normals)    # face normals       [F,3]


# ----------------------------------------------------------------------------- #
def inverse_sigmoid(x):
    return jnp.log(x / (1.0 - x))


if __name__ == "__main__":
    key = jax.random.PRNGKey(0)
    NUM_PLAYERS = 1
    V = 100    # vertices (not a multiple of 128 -> exercises padding path)
    F = 70     # faces
    K = 24     # SMPL joints

    ks = jax.random.split(key, 10)
    v_template = jax.random.normal(ks[0], (NUM_PLAYERS, V, 3), jnp.float32) * 0.5
    v_template = v_template - v_template[0].mean(0)
    faces = jax.random.randint(ks[1], (NUM_PLAYERS, F, 3), 0, V)
    weights = jax.nn.softmax(jax.random.normal(ks[2], (V, K), jnp.float32), axis=-1)
    J = jax.random.normal(ks[3], (NUM_PLAYERS, K, 3), jnp.float32) * 0.3
    displacements = jax.random.normal(ks[4], (NUM_PLAYERS, V, 3), jnp.float32) * 0.01
    scales = jax.random.normal(ks[5], (F, 2), jnp.float32) * 0.1 - 3.0
    rotations = jax.random.normal(ks[6], (F, 2), jnp.float32)
    opacity = inverse_sigmoid(jnp.ones((F, 1), jnp.float32) * 0.99)
    shs_dc = jnp.zeros((F, 1, 3), jnp.float32)
    parents = tuple([-1] + [i - 1 for i in range(1, K)])   # simple kinematic chain (static)

    params = dict(v_template=v_template, faces=faces, weights=weights, J=J,
                  displacements=displacements, scales=scales, rotations=rotations,
                  opacity=opacity, shs_dc=shs_dc)

    body_pose = jax.random.normal(ks[7], (NUM_PLAYERS, K - 1, 3), jnp.float32) * 0.2
    global_orient = jax.random.normal(ks[8], (NUM_PLAYERS, 3), jnp.float32) * 0.2
    transl = jax.random.normal(ks[9], (NUM_PLAYERS, 3), jnp.float32) * 0.1

    outs = smpl_forward(params, parents, body_pose, global_orient, transl)
    outs = jax.block_until_ready(outs)

    expected_shapes = [(F, 3), (F, 1), (F, 3), (F, 4), (F, 1, 3), (F, 3, 4), (V, 3), (F, 3)]
    assert [tuple(o.shape) for o in outs] == expected_shapes, \
        [tuple(o.shape) for o in outs]
    assert all(bool(jnp.all(jnp.isfinite(o))) for o in outs)
    print("KERNEL_OK")
</pallas_src>

<mosaic_0001>
module attributes {stable_mosaic.version = 11 : i64} {
  func.func @_lbs_pose_kernel(%arg0: i32, %arg1: memref<32x128xf32, #tpu.memory_space<vmem>>, %arg2: memref<16x32xf32, #tpu.memory_space<vmem>>, %arg3: memref<3x128xf32, #tpu.memory_space<vmem>>, %arg4: memref<3x128xf32, #tpu.memory_space<vmem>>) attributes {dimension_semantics = [#tpu.dimension_semantics<parallel>], iteration_bounds = array<i64: 2>, scalar_prefetch = 0 : i64, scratch_operands = 0 : i64, tpu.core_type = #tpu.core_type<tc>, window_params = [{transform_indices = @transform_0, window_bounds = array<i64: 32, 128>}, {pipeline_mode = #tpu.pipeline_mode<synchronous>, transform_indices = @transform_1, window_bounds = array<i64: 16, 32>}, {transform_indices = @transform_2, window_bounds = array<i64: 3, 128>}, {transform_indices = @transform_3, window_bounds = array<i64: 3, 128>}]} {
    %c0 = arith.constant 0 : index
    %c0_0 = arith.constant 0 : index
    %0 = vector.load %arg2[%c0, %c0_0] : memref<16x32xf32, #tpu.memory_space<vmem>>, vector<16x32xf32>
    %c0_1 = arith.constant 0 : index
    %c0_2 = arith.constant 0 : index
    %1 = vector.load %arg1[%c0_1, %c0_2] : memref<32x128xf32, #tpu.memory_space<vmem>>, vector<32x128xf32>
    %cst = arith.constant dense<0.000000e+00> : vector<16x128xf32>
    %2 = tpu.matmul %0, %1, %cst {dimension_numbers = #tpu.dot_dimension_numbers<[1], [0], [0], [1], [0, 0, 1, 1], [], []>} : vector<16x32xf32>, vector<32x128xf32>, vector<16x128xf32> -> vector<16x128xf32>
    %c0_3 = arith.constant 0 : index
    %c0_4 = arith.constant 0 : index
    %3 = vector.load %arg3[%c0_3, %c0_4] : memref<3x128xf32, #tpu.memory_space<vmem>>, vector<3x128xf32>
    %4 = vector.extract_strided_slice %3 {offsets = [0, 0], sizes = [1, 128], strides = [1, 1]} : vector<3x128xf32> to vector<1x128xf32>
    %5 = vector.extract_strided_slice %3 {offsets = [1, 0], sizes = [1, 128], strides = [1, 1]} : vector<3x128xf32> to vector<1x128xf32>
    %6 = vector.extract_strided_slice %3 {offsets = [2, 0], sizes = [1, 128], strides = [1, 1]} : vector<3x128xf32> to vector<1x128xf32>
    %7 = vector.extract_strided_slice %2 {offsets = [0, 0], sizes = [1, 128], strides = [1, 1]} : vector<16x128xf32> to vector<1x128xf32>
    %8 = arith.mulf %7, %4 : vector<1x128xf32>
    %9 = vector.extract_strided_slice %2 {offsets = [1, 0], sizes = [1, 128], strides = [1, 1]} : vector<16x128xf32> to vector<1x128xf32>
    %10 = arith.mulf %9, %5 : vector<1x128xf32>
    %11 = arith.addf %8, %10 : vector<1x128xf32>
    %12 = vector.extract_strided_slice %2 {offsets = [2, 0], sizes = [1, 128], strides = [1, 1]} : vector<16x128xf32> to vector<1x128xf32>
    %13 = arith.mulf %12, %6 : vector<1x128xf32>
    %14 = arith.addf %11, %13 : vector<1x128xf32>
    %15 = vector.extract_strided_slice %2 {offsets = [3, 0], sizes = [1, 128], strides = [1, 1]} : vector<16x128xf32> to vector<1x128xf32>
    %16 = arith.addf %14, %15 : vector<1x128xf32>
    %17 = vector.extract_strided_slice %2 {offsets = [4, 0], sizes = [1, 128], strides = [1, 1]} : vector<16x128xf32> to vector<1x128xf32>
    %18 = arith.mulf %17, %4 : vector<1x128xf32>
    %19 = vector.extract_strided_slice %2 {offsets = [5, 0], sizes = [1, 128], strides = [1, 1]} : vector<16x128xf32> to vector<1x128xf32>
    %20 = arith.mulf %19, %5 : vector<1x128xf32>
    %21 = arith.addf %18, %20 : vector<1x128xf32>
    %22 = vector.extract_strided_slice %2 {offsets = [6, 0], sizes = [1, 128], strides = [1, 1]} : vector<16x128xf32> to vector<1x128xf32>
    %23 = arith.mulf %22, %6 : vector<1x128xf32>
    %24 = arith.addf %21, %23 : vector<1x128xf32>
    %25 = vector.extract_strided_slice %2 {offsets = [7, 0], sizes = [1, 128], strides = [1, 1]} : vector<16x128xf32> to vector<1x128xf32>
    %26 = arith.addf %24, %25 : vector<1x128xf32>
    %27 = vector.extract_strided_slice %2 {offsets = [8, 0], sizes = [1, 128], strides = [1, 1]} : vector<16x128xf32> to vector<1x128xf32>
    %28 = arith.mulf %27, %4 : vector<1x128xf32>
    %29 = vector.extract_strided_slice %2 {offsets = [9, 0], sizes = [1, 128], strides = [1, 1]} : vector<16x128xf32> to vector<1x128xf32>
    %30 = arith.mulf %29, %5 : vector<1x128xf32>
    %31 = arith.addf %28, %30 : vector<1x128xf32>
    %32 = vector.extract_strided_slice %2 {offsets = [10, 0], sizes = [1, 128], strides = [1, 1]} : vector<16x128xf32> to vector<1x128xf32>
    %33 = arith.mulf %32, %6 : vector<1x128xf32>
    %34 = arith.addf %31, %33 : vector<1x128xf32>
    %35 = vector.extract_strided_slice %2 {offsets = [11, 0], sizes = [1, 128], strides = [1, 1]} : vector<16x128xf32> to vector<1x128xf32>
    %36 = arith.addf %34, %35 : vector<1x128xf32>
    %37 = tpu.concatenate %16, %26, %36 in 0 : vector<1x128xf32>, vector<1x128xf32>, vector<1x128xf32> -> vector<3x128xf32>
    %c0_5 = arith.constant 0 : index
    %c0_6 = arith.constant 0 : index
    %38 = vector.load %arg4[%c0_5, %c0_6] : memref<3x128xf32, #tpu.memory_space<vmem>>, vector<3x128xf32>
    tpu.vector_store %arg4[%c0_5, %c0_6], %37 {strides = array<i32>} : memref<3x128xf32, #tpu.memory_space<vmem>>, vector<3x128xf32>,
    return
  }
  func.func @transform_0(%arg0: i32) -> (i32, i32) {
    %c0_i32 = arith.constant 0 : i32
    %c0_i32_0 = arith.constant 0 : i32
    return %c0_i32, %arg0 : i32, i32
  }
  func.func @transform_1(%arg0: i32) -> (i32, i32) {
    %c0_i32 = arith.constant 0 : i32
    %c0_i32_0 = arith.constant 0 : i32
    %c0_i32_1 = arith.constant 0 : i32
    return %c0_i32, %c0_i32_0 : i32, i32
  }
  func.func @transform_2(%arg0: i32) -> (i32, i32) {
    %c0_i32 = arith.constant 0 : i32
    %c0_i32_0 = arith.constant 0 : i32
    return %c0_i32, %arg0 : i32, i32
  }
  func.func @transform_3(%arg0: i32) -> (i32, i32) {
    %c0_i32 = arith.constant 0 : i32
    %c0_i32_0 = arith.constant 0 : i32
    return %c0_i32, %arg0 : i32, i32
  }
}

module attributes {stable_mosaic.version = 11 : i64} {
  func.func @_face_geom_kernel(%arg0: i32, %arg1: memref<9x128xf32, #tpu.memory_space<vmem>>, %arg2: memref<2x128xf32, #tpu.memory_space<vmem>>, %arg3: memref<2x128xf32, #tpu.memory_space<vmem>>, %arg4: memref<1x128xf32, #tpu.memory_space<vmem>>, %arg5: memref<16x128xf32, #tpu.memory_space<vmem>>) attributes {dimension_semantics = [#tpu.dimension_semantics<parallel>], iteration_bounds = array<i64: 2>, scalar_prefetch = 0 : i64, scratch_operands = 0 : i64, tpu.core_type = #tpu.core_type<tc>, window_params = [{transform_indices = @transform_0, window_bounds = array<i64: 9, 128>}, {transform_indices = @transform_1, window_bounds = array<i64: 2, 128>}, {transform_indices = @transform_2, window_bounds = array<i64: 2, 128>}, {transform_indices = @transform_3, window_bounds = array<i64: 1, 128>}, {transform_indices = @transform_4, window_bounds = array<i64: 16, 128>}]} {
    %c0 = arith.constant 0 : index
    %c0_0 = arith.constant 0 : index
    %0 = vector.load %arg1[%c0, %c0_0] : memref<9x128xf32, #tpu.memory_space<vmem>>, vector<9x128xf32>
    %1 = vector.extract_strided_slice %0 {offsets = [0, 0], sizes = [1, 128], strides = [1, 1]} : vector<9x128xf32> to vector<1x128xf32>
    %2 = vector.extract_strided_slice %0 {offsets = [1, 0], sizes = [1, 128], strides = [1, 1]} : vector<9x128xf32> to vector<1x128xf32>
    %3 = vector.extract_strided_slice %0 {offsets = [2, 0], sizes = [1, 128], strides = [1, 1]} : vector<9x128xf32> to vector<1x128xf32>
    %4 = vector.extract_strided_slice %0 {offsets = [3, 0], sizes = [1, 128], strides = [1, 1]} : vector<9x128xf32> to vector<1x128xf32>
    %5 = vector.extract_strided_slice %0 {offsets = [4, 0], sizes = [1, 128], strides = [1, 1]} : vector<9x128xf32> to vector<1x128xf32>
    %6 = vector.extract_strided_slice %0 {offsets = [5, 0], sizes = [1, 128], strides = [1, 1]} : vector<9x128xf32> to vector<1x128xf32>
    %7 = vector.extract_strided_slice %0 {offsets = [6, 0], sizes = [1, 128], strides = [1, 1]} : vector<9x128xf32> to vector<1x128xf32>
    %8 = vector.extract_strided_slice %0 {offsets = [7, 0], sizes = [1, 128], strides = [1, 1]} : vector<9x128xf32> to vector<1x128xf32>
    %9 = vector.extract_strided_slice %0 {offsets = [8, 0], sizes = [1, 128], strides = [1, 1]} : vector<9x128xf32> to vector<1x128xf32>
    %10 = arith.addf %1, %4 : vector<1x128xf32>
    %11 = arith.addf %10, %7 : vector<1x128xf32>
    %cst = arith.constant 0.333333343 : f32
    %12 = vector.broadcast %cst : f32 to vector<1x128xf32>
    %13 = arith.mulf %11, %12 : vector<1x128xf32>
    %14 = arith.addf %2, %5 : vector<1x128xf32>
    %15 = arith.addf %14, %8 : vector<1x128xf32>
    %cst_1 = arith.constant 0.333333343 : f32
    %16 = vector.broadcast %cst_1 : f32 to vector<1x128xf32>
    %17 = arith.mulf %15, %16 : vector<1x128xf32>
    %18 = arith.addf %3, %6 : vector<1x128xf32>
    %19 = arith.addf %18, %9 : vector<1x128xf32>
    %cst_2 = arith.constant 0.333333343 : f32
    %20 = vector.broadcast %cst_2 : f32 to vector<1x128xf32>
    %21 = arith.mulf %19, %20 : vector<1x128xf32>
    %22 = arith.subf %4, %1 : vector<1x128xf32>
    %23 = arith.subf %5, %2 : vector<1x128xf32>
    %24 = arith.subf %6, %3 : vector<1x128xf32>
    %25 = arith.subf %7, %1 : vector<1x128xf32>
    %26 = arith.subf %8, %2 : vector<1x128xf32>
    %27 = arith.subf %9, %3 : vector<1x128xf32>
    %28 = arith.mulf %23, %27 : vector<1x128xf32>
    %29 = arith.mulf %24, %26 : vector<1x128xf32>
    %30 = arith.subf %28, %29 : vector<1x128xf32>
    %31 = arith.mulf %24, %25 : vector<1x128xf32>
    %32 = arith.mulf %22, %27 : vector<1x128xf32>
    %33 = arith.subf %31, %32 : vector<1x128xf32>
    %34 = arith.mulf %22, %26 : vector<1x128xf32>
    %35 = arith.mulf %23, %25 : vector<1x128xf32>
    %36 = arith.subf %34, %35 : vector<1x128xf32>
    %37 = arith.mulf %30, %30 : vector<1x128xf32>
    %38 = arith.mulf %33, %33 : vector<1x128xf32>
    %39 = arith.addf %37, %38 : vector<1x128xf32>
    %40 = arith.mulf %36, %36 : vector<1x128xf32>
    %41 = arith.addf %39, %40 : vector<1x128xf32>
    %cst_3 = arith.constant 9.99999996E-13 : f32
    %42 = vector.broadcast %cst_3 : f32 to vector<1x128xf32>
    %43 = arith.maximumf %41, %42 : vector<1x128xf32>
    %44 = math.rsqrt %43 : vector<1x128xf32>
    %45 = arith.mulf %30, %44 : vector<1x128xf32>
    %46 = arith.mulf %33, %44 : vector<1x128xf32>
    %47 = arith.mulf %36, %44 : vector<1x128xf32>
    %48 = arith.subf %1, %4 : vector<1x128xf32>
    %49 = arith.subf %2, %5 : vector<1x128xf32>
    %50 = arith.subf %3, %6 : vector<1x128xf32>
    %51 = arith.mulf %48, %48 : vector<1x128xf32>
    %52 = arith.mulf %49, %49 : vector<1x128xf32>
    %53 = arith.addf %51, %52 : vector<1x128xf32>
    %54 = arith.mulf %50, %50 : vector<1x128xf32>
    %55 = arith.addf %53, %54 : vector<1x128xf32>
    %cst_4 = arith.constant 1.000000e-24 : f32
    %56 = vector.broadcast %cst_4 : f32 to vector<1x128xf32>
    %57 = arith.maximumf %55, %56 : vector<1x128xf32>
    %58 = math.rsqrt %57 : vector<1x128xf32>
    %59 = arith.mulf %48, %58 : vector<1x128xf32>
    %60 = arith.mulf %49, %58 : vector<1x128xf32>
    %61 = arith.mulf %50, %58 : vector<1x128xf32>
    %62 = arith.mulf %46, %61 : vector<1x128xf32>
    %63 = arith.mulf %47, %60 : vector<1x128xf32>
    %64 = arith.subf %62, %63 : vector<1x128xf32>
    %65 = arith.mulf %47, %59 : vector<1x128xf32>
    %66 = arith.mulf %45, %61 : vector<1x128xf32>
    %67 = arith.subf %65, %66 : vector<1x128xf32>
    %68 = arith.mulf %45, %60 : vector<1x128xf32>
    %69 = arith.mulf %46, %59 : vector<1x128xf32>
    %70 = arith.subf %68, %69 : vector<1x128xf32>
    %71 = arith.mulf %64, %64 : vector<1x128xf32>
    %72 = arith.mulf %67, %67 : vector<1x128xf32>
    %73 = arith.addf %71, %72 : vector<1x128xf32>
    %74 = arith.mulf %70, %70 : vector<1x128xf32>
    %75 = arith.addf %73, %74 : vector<1x128xf32>
    %cst_5 = arith.constant 1.000000e-24 : f32
    %76 = vector.broadcast %cst_5 : f32 to vector<1x128xf32>
    %77 = arith.maximumf %75, %76 : vector<1x128xf32>
    %78 = math.rsqrt %77 : vector<1x128xf32>
    %79 = arith.mulf %64, %78 : vector<1x128xf32>
    %80 = arith.mulf %67, %78 : vector<1x128xf32>
    %81 = arith.mulf %70, %78 : vector<1x128xf32>
    %c0_6 = arith.constant 0 : index
    %c0_7 = arith.constant 0 : index
    %82 = vector.load %arg2[%c0_6, %c0_7] : memref<2x128xf32, #tpu.memory_space<vmem>>, vector<2x128xf32>
    %83 = vector.extract_strided_slice %82 {offsets = [0, 0], sizes = [1, 128], strides = [1, 1]} : vector<2x128xf32> to vector<1x128xf32>
    %84 = vector.extract_strided_slice %82 {offsets = [1, 0], sizes = [1, 128], strides = [1, 1]} : vector<2x128xf32> to vector<1x128xf32>
    %85 = arith.mulf %83, %83 : vector<1x128xf32>
    %86 = arith.mulf %84, %84 : vector<1x128xf32>
    %87 = arith.addf %85, %86 : vector<1x128xf32>
    %cst_8 = arith.constant 1.000000e-24 : f32
    %88 = vector.broadcast %cst_8 : f32 to vector<1x128xf32>
    %89 = arith.maximumf %87, %88 : vector<1x128xf32>
    %90 = math.rsqrt %89 : vector<1x128xf32>
    %91 = arith.mulf %83, %90 : vector<1x128xf32>
    %92 = arith.mulf %84, %90 : vector<1x128xf32>
    %93 = arith.mulf %91, %59 : vector<1x128xf32>
    %94 = arith.mulf %92, %79 : vector<1x128xf32>
    %95 = arith.addf %93, %94 : vector<1x128xf32>
    %96 = arith.mulf %91, %60 : vector<1x128xf32>
    %97 = arith.mulf %92, %80 : vector<1x128xf32>
    %98 = arith.addf %96, %97 : vector<1x128xf32>
    %99 = arith.mulf %91, %61 : vector<1x128xf32>
    %100 = arith.mulf %92, %81 : vector<1x128xf32>
    %101 = arith.addf %99, %100 : vector<1x128xf32>
    %cst_9 = arith.constant 0.000000e+00 : f32
    %102 = vector.broadcast %cst_9 : f32 to vector<1x128xf32>
    %103 = arith.subf %102, %92 : vector<1x128xf32>
    %104 = arith.mulf %103, %59 : vector<1x128xf32>
    %105 = arith.mulf %91, %79 : vector<1x128xf32>
    %106 = arith.addf %104, %105 : vector<1x128xf32>
    %cst_10 = arith.constant 0.000000e+00 : f32
    %107 = vector.broadcast %cst_10 : f32 to vector<1x128xf32>
    %108 = arith.subf %107, %92 : vector<1x128xf32>
    %109 = arith.mulf %108, %60 : vector<1x128xf32>
    %110 = arith.mulf %91, %80 : vector<1x128xf32>
    %111 = arith.addf %109, %110 : vector<1x128xf32>
    %cst_11 = arith.constant 0.000000e+00 : f32
    %112 = vector.broadcast %cst_11 : f32 to vector<1x128xf32>
    %113 = arith.subf %112, %92 : vector<1x128xf32>
    %114 = arith.mulf %113, %61 : vector<1x128xf32>
    %115 = arith.mulf %91, %81 : vector<1x128xf32>
    %116 = arith.addf %114, %115 : vector<1x128xf32>
    %cst_12 = arith.constant 1.000000e+00 : f32
    %117 = vector.broadcast %cst_12 : f32 to vector<1x128xf32>
    %118 = arith.addf %117, %45 : vector<1x128xf32>
    %119 = arith.addf %118, %98 : vector<1x128xf32>
    %120 = arith.addf %119, %116 : vector<1x128xf32>
    %cst_13 = arith.constant 0.000000e+00 : f32
    %121 = vector.broadcast %cst_13 : f32 to vector<1x128xf32>
    %122 = arith.maximumf %120, %121 : vector<1x128xf32>
    %123 = math.sqrt %122 : vector<1x128xf32>
    %cst_14 = arith.constant 1.000000e+00 : f32
    %124 = vector.broadcast %cst_14 : f32 to vector<1x128xf32>
    %125 = arith.addf %124, %45 : vector<1x128xf32>
    %126 = arith.subf %125, %98 : vector<1x128xf32>
    %127 = arith.subf %126, %116 : vector<1x128xf32>
    %cst_15 = arith.constant 0.000000e+00 : f32
    %128 = vector.broadcast %cst_15 : f32 to vector<1x128xf32>
    %129 = arith.maximumf %127, %128 : vector<1x128xf32>
    %130 = math.sqrt %129 : vector<1x128xf32>
    %cst_16 = arith.constant 1.000000e+00 : f32
    %131 = vector.broadcast %cst_16 : f32 to vector<1x128xf32>
    %132 = arith.subf %131, %45 : vector<1x128xf32>
    %133 = arith.addf %132, %98 : vector<1x128xf32>
    %134 = arith.subf %133, %116 : vector<1x128xf32>
    %cst_17 = arith.constant 0.000000e+00 : f32
    %135 = vector.broadcast %cst_17 : f32 to vector<1x128xf32>
    %136 = arith.maximumf %134, %135 : vector<1x128xf32>
    %137 = math.sqrt %136 : vector<1x128xf32>
    %cst_18 = arith.constant 1.000000e+00 : f32
    %138 = vector.broadcast %cst_18 : f32 to vector<1x128xf32>
    %139 = arith.subf %138, %45 : vector<1x128xf32>
    %140 = arith.subf %139, %98 : vector<1x128xf32>
    %141 = arith.addf %140, %116 : vector<1x128xf32>
    %cst_19 = arith.constant 0.000000e+00 : f32
    %142 = vector.broadcast %cst_19 : f32 to vector<1x128xf32>
    %143 = arith.maximumf %141, %142 : vector<1x128xf32>
    %144 = math.sqrt %143 : vector<1x128xf32>
    %cst_20 = arith.constant 1.000000e-01 : f32
    %145 = vector.broadcast %cst_20 : f32 to vector<1x128xf32>
    %146 = arith.maximumf %123, %145 : vector<1x128xf32>
    %147 = tpu.reciprocal %146 {approx = true} : vector<1x128xf32> -> vector<1x128xf32>
    %cst_21 = arith.constant 5.000000e-01 : f32
    %148 = vector.broadcast %cst_21 : f32 to vector<1x128xf32>
    %149 = arith.mulf %148, %147 : vector<1x128xf32>
    %cst_22 = arith.constant 1.000000e-01 : f32
    %150 = vector.broadcast %cst_22 : f32 to vector<1x128xf32>
    %151 = arith.maximumf %130, %150 : vector<1x128xf32>
    %152 = tpu.reciprocal %151 {approx = true} : vector<1x128xf32> -> vector<1x128xf32>
    %cst_23 = arith.constant 5.000000e-01 : f32
    %153 = vector.broadcast %cst_23 : f32 to vector<1x128xf32>
    %154 = arith.mulf %153, %152 : vector<1x128xf32>
    %cst_24 = arith.constant 1.000000e-01 : f32
    %155 = vector.broadcast %cst_24 : f32 to vector<1x128xf32>
    %156 = arith.maximumf %137, %155 : vector<1x128xf32>
    %157 = tpu.reciprocal %156 {approx = true} : vector<1x128xf32> -> vector<1x128xf32>
    %cst_25 = arith.constant 5.000000e-01 : f32
    %158 = vector.broadcast %cst_25 : f32 to vector<1x128xf32>
    %159 = arith.mulf %158, %157 : vector<1x128xf32>
    %cst_26 = arith.constant 1.000000e-01 : f32
    %160 = vector.broadcast %cst_26 : f32 to vector<1x128xf32>
    %161 = arith.maximumf %144, %160 : vector<1x128xf32>
    %162 = tpu.reciprocal %161 {approx = true} : vector<1x128xf32> -> vector<1x128xf32>
    %cst_27 = arith.constant 5.000000e-01 : f32
    %163 = vector.broadcast %cst_27 : f32 to vector<1x128xf32>
    %164 = arith.mulf %163, %162 : vector<1x128xf32>
    %165 = arith.mulf %123, %123 : vector<1x128xf32>
    %166 = arith.mulf %165, %149 : vector<1x128xf32>
    %167 = arith.subf %101, %111 : vector<1x128xf32>
    %168 = arith.mulf %167, %149 : vector<1x128xf32>
    %169 = arith.subf %106, %47 : vector<1x128xf32>
    %170 = arith.mulf %169, %149 : vector<1x128xf32>
    %171 = arith.subf %46, %95 : vector<1x128xf32>
    %172 = arith.mulf %171, %149 : vector<1x128xf32>
    %173 = arith.subf %101, %111 : vector<1x128xf32>
    %174 = arith.mulf %173, %154 : vector<1x128xf32>
    %175 = arith.mulf %130, %130 : vector<1x128xf32>
    %176 = arith.mulf %175, %154 : vector<1x128xf32>
    %177 = arith.addf %46, %95 : vector<1x128xf32>
    %178 = arith.mulf %177, %154 : vector<1x128xf32>
    %179 = arith.addf %106, %47 : vector<1x128xf32>
    %180 = arith.mulf %179, %154 : vector<1x128xf32>
    %181 = arith.subf %106, %47 : vector<1x128xf32>
    %182 = arith.mulf %181, %159 : vector<1x128xf32>
    %183 = arith.addf %46, %95 : vector<1x128xf32>
    %184 = arith.mulf %183, %159 : vector<1x128xf32>
    %185 = arith.mulf %137, %137 : vector<1x128xf32>
    %186 = arith.mulf %185, %159 : vector<1x128xf32>
    %187 = arith.addf %111, %101 : vector<1x128xf32>
    %188 = arith.mulf %187, %159 : vector<1x128xf32>
    %189 = arith.subf %46, %95 : vector<1x128xf32>
    %190 = arith.mulf %189, %164 : vector<1x128xf32>
    %191 = arith.addf %47, %106 : vector<1x128xf32>
    %192 = arith.mulf %191, %164 : vector<1x128xf32>
    %193 = arith.addf %101, %111 : vector<1x128xf32>
    %194 = arith.mulf %193, %164 : vector<1x128xf32>
    %195 = arith.mulf %144, %144 : vector<1x128xf32>
    %196 = arith.mulf %195, %164 : vector<1x128xf32>
    %197 = arith.maximumf %123, %130 : vector<1x128xf32>
    %198 = arith.maximumf %137, %144 : vector<1x128xf32>
    %199 = arith.maximumf %197, %198 : vector<1x128xf32>
    %200 = arith.cmpf oge, %123, %199 : vector<1x128xf32>
    %cst_28 = arith.constant dense<true> : vector<1x128xi1>
    %201 = arith.xori %200, %cst_28 : vector<1x128xi1>
    %202 = arith.cmpf oge, %130, %199 : vector<1x128xf32>
    %203 = arith.andi %201, %202 : vector<1x128xi1>
    %204 = arith.ori %200, %203 : vector<1x128xi1>
    %cst_29 = arith.constant dense<true> : vector<1x128xi1>
    %205 = arith.xori %204, %cst_29 : vector<1x128xi1>
    %206 = arith.cmpf oge, %137, %199 : vector<1x128xf32>
    %207 = arith.andi %205, %206 : vector<1x128xi1>
    %208 = arith.select %207, %182, %190 : vector<1x128xi1>, vector<1x128xf32>
    %209 = arith.select %203, %174, %208 : vector<1x128xi1>, vector<1x128xf32>
    %210 = arith.select %200, %166, %209 : vector<1x128xi1>, vector<1x128xf32>
    %211 = arith.select %207, %184, %192 : vector<1x128xi1>, vector<1x128xf32>
    %212 = arith.select %203, %176, %211 : vector<1x128xi1>, vector<1x128xf32>
    %213 = arith.select %200, %168, %212 : vector<1x128xi1>, vector<1x128xf32>
    %214 = arith.select %207, %186, %194 : vector<1x128xi1>, vector<1x128xf32>
    %215 = arith.select %203, %178, %214 : vector<1x128xi1>, vector<1x128xf32>
    %216 = arith.select %200, %170, %215 : vector<1x128xi1>, vector<1x128xf32>
    %217 = arith.select %207, %188, %196 : vector<1x128xi1>, vector<1x128xf32>
    %218 = arith.select %203, %180, %217 : vector<1x128xi1>, vector<1x128xf32>
    %219 = arith.select %200, %172, %218 : vector<1x128xi1>, vector<1x128xf32>
    %220 = arith.mulf %210, %210 : vector<1x128xf32>
    %221 = arith.mulf %213, %213 : vector<1x128xf32>
    %222 = arith.addf %220, %221 : vector<1x128xf32>
    %223 = arith.mulf %216, %216 : vector<1x128xf32>
    %224 = arith.addf %222, %223 : vector<1x128xf32>
    %225 = arith.mulf %219, %219 : vector<1x128xf32>
    %226 = arith.addf %224, %225 : vector<1x128xf32>
    %cst_30 = arith.constant 1.000000e-24 : f32
    %227 = vector.broadcast %cst_30 : f32 to vector<1x128xf32>
    %228 = arith.maximumf %226, %227 : vector<1x128xf32>
    %229 = math.rsqrt %228 : vector<1x128xf32>
    %230 = arith.mulf %210, %229 : vector<1x128xf32>
    %231 = arith.mulf %213, %229 : vector<1x128xf32>
    %232 = arith.mulf %216, %229 : vector<1x128xf32>
    %233 = arith.mulf %219, %229 : vector<1x128xf32>
    %cst_31 = arith.constant 1.000000e-03 : f32
    %234 = vector.broadcast %cst_31 : f32 to vector<1x128xf32>
    %c0_32 = arith.constant 0 : index
    %c0_33 = arith.constant 0 : index
    %235 = vector.load %arg3[%c0_32, %c0_33] : memref<2x128xf32, #tpu.memory_space<vmem>>, vector<2x128xf32>
    %236 = math.exp %235 : vector<2x128xf32>
    %c0_34 = arith.constant 0 : index
    %c0_35 = arith.constant 0 : index
    %237 = vector.load %arg4[%c0_34, %c0_35] : memref<1x128xf32, #tpu.memory_space<vmem>>, vector<1x128xf32>
    %cst_36 = arith.constant 0.000000e+00 : f32
    %238 = vector.broadcast %cst_36 : f32 to vector<1x128xf32>
    %239 = arith.subf %238, %237 : vector<1x128xf32>
    %240 = math.exp %239 : vector<1x128xf32>
    %cst_37 = arith.constant 1.000000e+00 : f32
    %241 = vector.broadcast %cst_37 : f32 to vector<1x128xf32>
    %242 = arith.addf %241, %240 : vector<1x128xf32>
    %243 = tpu.reciprocal %242 {approx = true} : vector<1x128xf32> -> vector<1x128xf32>
    %cst_38 = arith.constant 0.000000e+00 : f32
    %244 = vector.broadcast %cst_38 : f32 to vector<2x128xf32>
    %245 = tpu.concatenate %13, %17, %21, %45, %46, %47, %230, %231, %232, %233, %234, %236, %243, %244 in 0 : vector<1x128xf32>, vector<1x128xf32>, vector<1x128xf32>, vector<1x128xf32>, vector<1x128xf32>, vector<1x128xf32>, vector<1x128xf32>, vector<1x128xf32>, vector<1x128xf32>, vector<1x128xf32>, vector<1x128xf32>, vector<2x128xf32>, vector<1x128xf32>, vector<2x128xf32> -> vector<16x128xf32>
    %c0_39 = arith.constant 0 : index
    %c0_40 = arith.constant 0 : index
    %246 = vector.load %arg5[%c0_39, %c0_40] : memref<16x128xf32, #tpu.memory_space<vmem>>, vector<16x128xf32>
    tpu.vector_store %arg5[%c0_39, %c0_40], %245 {strides = array<i32>} : memref<16x128xf32, #tpu.memory_space<vmem>>, vector<16x128xf32>,
    return
  }
  func.func @transform_0(%arg0: i32) -> (i32, i32) {
    %c0_i32 = arith.constant 0 : i32
    %c0_i32_0 = arith.constant 0 : i32
    return %c0_i32, %arg0 : i32, i32
  }
  func.func @transform_1(%arg0: i32) -> (i32, i32) {
    %c0_i32 = arith.constant 0 : i32
    %c0_i32_0 = arith.constant 0 : i32
    return %c0_i32, %arg0 : i32, i32
  }
  func.func @transform_2(%arg0: i32) -> (i32, i32) {
    %c0_i32 = arith.constant 0 : i32
    %c0_i32_0 = arith.constant 0 : i32
    return %c0_i32, %arg0 : i32, i32
  }
  func.func @transform_3(%arg0: i32) -> (i32, i32) {
    %c0_i32 = arith.constant 0 : i32
    %c0_i32_0 = arith.constant 0 : i32
    return %c0_i32, %arg0 : i32, i32
  }
  func.func @transform_4(%arg0: i32) -> (i32, i32) {
    %c0_i32 = arith.constant 0 : i32
    %c0_i32_0 = arith.constant 0 : i32
    return %c0_i32, %arg0 : i32, i32
  }
}

</mosaic_0001>

<llo_original>
// kernel: smpl_forward.2
$region0: #{smpl_forward.2}
  #allocation0 [shape = 'u32[]', space=smem, size = 0x4, offset = 0x4, fixed_abs, tag = 'smem constant byte address 0x4 - core index']
  #allocation1 [shape = 'u32[144,128]{1,0:T(1,128)}', space=vmem, size = 0x12000, scoped, tag = 'internal scratch']
  %s0 = inlined_call_operand.vmem [shape: f32[32,256], index: 0, kind: input, shape index: {}]
  %s1 = inlined_call_operand.vmem [shape: f32[16,32], index: 1, kind: input, shape index: {}]
  %s2 = inlined_call_operand.vmem [shape: f32[3,256], index: 2, kind: input, shape index: {}]
  %s3 = inlined_call_operand.vmem [shape: f32[3,256], index: 3, kind: output, shape index: {}]
  %s4 = sld [smem:[#allocation0]]
  $region83: #{smpl_forward.2} parent=0
    _
  %s6 = ssub.s32 1, %s4
  %s7 = scalar_select 0, %s6, %s4
  $region1: #{smpl_forward.2} parent=0
    #allocation2 [shape = 'u8[32768]{0}', space=vmem, size = 0x8000, scoped, tag = 'input window, operand 0']
    loop: start=0, step=1, limit=4
    $region2: #{smpl_forward.2} parent=1 // loop_pre_header
      _
    $region3: #{smpl_forward.2} parent=1 // loop_header
      %s9 = sphi 0, %s13
      %p10 = scmp.ge.s32.totalorder %s9, 4
      %s19 = sphi 0, %s21
      %s22 = sphi 0, %s19
      %s23 = sphi 0, %s22
      %s39 = sphi 0, %s23
      %s43 = sphi 0, %s43
      %s45 = sphi 0, %s43
      %s46 = sphi 0, %s45
      %s60 = sphi 0, %s46
      %s66 = sphi 0, %s68
      %s69 = sphi 0, %s66
      %s70 = sphi 0, %s69
      %s86 = sphi 0, %s70
      %s92 = sphi 0, %s94
      %s95 = sphi 0, %s92
      %s96 = sphi 0, %s95
      %s112 = sphi 0, %s96
    $region4: #{smpl_forward.2} parent=1 // loop_header_branch
      %12 = sbr.rel (%p10) target = $region8
    $region5: #{smpl_forward.2} parent=1 // loop_body
      %s14 = ssub.s32 %s9, 1
      %s15 = ssub.s32 %s9, 2
      %s16 = sadd.s32 %s9, 1
      %s17 = ssub.s32 %s9, %s16
      %p18 = scmp.eq.s32.totalorder %s17, 0
      %s20 = sadd.s32 %s19, 1
      %s21 = scalar_select %p18, %s19, %s20
      %p24 = pneg %p18
      %p25 = scmp.eq.s32.totalorder %s9, 1
      %p26 = por %p24, %p25
      %p27 = scmp.ne.s32.totalorder %s19, %s22
      %p28 = scmp.eq.s32.totalorder %s9, 0
      %p29 = por %p27, %p28
      %p30 = scmp.ne.s32.totalorder %s19, %s22
      %p31 = scmp.eq.s32.totalorder %s14, 1
      %p32 = por %p30, %p31
      %p33 = scmp.ne.s32.totalorder %s22, %s23
      %p34 = scmp.eq.s32.totalorder %s14, 0
      %p35 = por %p33, %p34
      %p36 = scmp.ne.s32.totalorder %s22, %s23
      %p37 = scmp.eq.s32.totalorder %s15, 1
      %p38 = por %p36, %p37
      %p40 = scmp.ne.s32.totalorder %s23, %s39
      %p41 = scmp.eq.s32.totalorder %s15, 0
      %p42 = por %p40, %p41
      %s44 = sadd.s32 %s43, 1
      %p47 = scmp.eq.s32.totalorder %s9, 1
      %p48 = scmp.ne.s32.totalorder %s43, %s45
      %p49 = scmp.eq.s32.totalorder %s9, 0
      %p50 = por %p48, %p49
      %p51 = scmp.ne.s32.totalorder %s43, %s45
      %p52 = scmp.eq.s32.totalorder %s14, 1
      %p53 = por %p51, %p52
      %p54 = scmp.ne.s32.totalorder %s45, %s46
      %p55 = scmp.eq.s32.totalorder %s14, 0
      %p56 = por %p54, %p55
      %p57 = scmp.ne.s32.totalorder %s45, %s46
      %p58 = scmp.eq.s32.totalorder %s15, 1
      %p59 = por %p57, %p58
      %p61 = scmp.ne.s32.totalorder %s46, %s60
      %p62 = scmp.eq.s32.totalorder %s15, 0
      %p63 = por %p61, %p62
      %s64 = ssub.s32 %s9, %s16
      %p65 = scmp.eq.s32.totalorder %s64, 0
      %s67 = sadd.s32 %s66, 1
      %s68 = scalar_select %p65, %s66, %s67
      %p71 = pneg %p65
      %p72 = scmp.eq.s32.totalorder %s9, 1
      %p73 = por %p71, %p72
      %p74 = scmp.ne.s32.totalorder %s66, %s69
      %p75 = scmp.eq.s32.totalorder %s9, 0
      %p76 = por %p74, %p75
      %p77 = scmp.ne.s32.totalorder %s66, %s69
      %p78 = scmp.eq.s32.totalorder %s14, 1
      %p79 = por %p77, %p78
      %p80 = scmp.ne.s32.totalorder %s69, %s70
      %p81 = scmp.eq.s32.totalorder %s14, 0
      %p82 = por %p80, %p81
      %p83 = scmp.ne.s32.totalorder %s69, %s70
      %p84 = scmp.eq.s32.totalorder %s15, 1
      %p85 = por %p83, %p84
      %p87 = scmp.ne.s32.totalorder %s70, %s86
      %p88 = scmp.eq.s32.totalorder %s15, 0
      %p89 = por %p87, %p88
      %s90 = ssub.s32 %s9, %s16
      %p91 = scmp.eq.s32.totalorder %s90, 0
      %s93 = sadd.s32 %s92, 1
      %s94 = scalar_select %p91, %s92, %s93
      %p97 = pneg %p91
      %p98 = scmp.eq.s32.totalorder %s9, 1
      %p99 = por %p97, %p98
      %p100 = scmp.ne.s32.totalorder %s92, %s95
      %p101 = scmp.eq.s32.totalorder %s9, 0
      %p102 = por %p100, %p101
      %p103 = scmp.ne.s32.totalorder %s92, %s95
      %p104 = scmp.eq.s32.totalorder %s14, 1
      %p105 = por %p103, %p104
      %p106 = scmp.ne.s32.totalorder %s95, %s96
      %p107 = scmp.eq.s32.totalorder %s14, 0
      %p108 = por %p106, %p107
      %p109 = scmp.ne.s32.totalorder %s95, %s96
      %p110 = scmp.eq.s32.totalorder %s15, 1
      %p111 = por %p109, %p110
      %p113 = scmp.ne.s32.totalorder %s96, %s112
      %p114 = scmp.eq.s32.totalorder %s15, 0
      %p115 = por %p113, %p114
      %p116 = scmp.le.s32.totalorder 1, %s9
      %p117 = scmp.lt.s32.totalorder %s9, 3
      %p118 = pnand %p116, %p117
      %p119 = pneg %p118
      // Predicated region
      $region9: #{smpl_forward.2} parent=5 // pred_check
        _
      $region10: #{smpl_forward.2} parent=5 // pred_check_branch
        %121 = sbr.rel (%p118) target = $region12
      $region11: #{smpl_forward.2} parent=5 // pred_region
        %s122 = ssub.s32 %s9, 1
        // Predicated region
        $region13: #{smpl_forward.2} parent=11 // pred_check
          %p123 = pneg %p56
        $region14: #{smpl_forward.2} parent=11 // pred_check_branch
          %125 = sbr.rel (%p123) target = $region16
        $region15: #{smpl_forward.2} parent=11 // pred_region
          _
        $region16: #{smpl_forward.2} parent=11 // pred_fallthru
          _
      $region12: #{smpl_forward.2} parent=5 // pred_fallthru
        _
      %p126 = scmp.lt.s32.totalorder %s9, 2
      // Predicated region
      $region17: #{smpl_forward.2} parent=5 // pred_check
        %p127 = pneg %p126
      $region18: #{smpl_forward.2} parent=5 // pred_check_branch
        %129 = sbr.rel (%p127) target = $region20
      $region19: #{smpl_forward.2} parent=5 // pred_region
        // Predicated region
        $region21: #{smpl_forward.2} parent=19 // pred_check
          %p130 = pneg %p29
        $region22: #{smpl_forward.2} parent=19 // pred_check_branch
          %132 = sbr.rel (%p130) target = $region24
        $region23: #{smpl_forward.2} parent=19 // pred_region
          %s133 = sand.u32 %s19, 1
          %s134 = sand.u32 %s19, 1
          %s135 = smul.addr %s134, 32
          %s136 = scalar_lea.vmem [#allocation2], %s135
          %s137 = smul.addr %s9, 8
          %s138 = scalar_lea.vmem %s0, %s137
          // Predicated region
          $region25: #{smpl_forward.2} parent=23 // pred_check
            _
          $region26: #{smpl_forward.2} parent=23 // pred_check_branch
            %140 = sbr.rel (0) target = $region28
          $region27: #{smpl_forward.2} parent=23 // pred_region
            // Predicated region
            $region29: #{smpl_forward.2} parent=27 // pred_check
              _
            $region30: #{smpl_forward.2} parent=27 // pred_check_branch
              %142 = sbr.rel (0) target = $region32
            $region31: #{smpl_forward.2} parent=27 // pred_region
              // Predicated region
              $region44: #{smpl_forward.2} parent=31 // pred_check
                _
              $region45: #{smpl_forward.2} parent=31 // pred_check_branch
                %163 = sbr.rel (0) target = $region47
              $region46: #{smpl_forward.2} parent=31 // pred_region
                loop: start=0, step=1, limit=1
                $region48: #{smpl_forward.2} parent=46 // loop_pre_header
                  _
                $region49: #{smpl_forward.2} parent=46 // loop_header
                  %s165 = sphi 0, %s169
                  %p166 = scmp.ge.s32.totalorder %s165, 1
                  %s170 = sphi %s138, %s138
                  %s171 = sphi %s136, %s136
                $region50: #{smpl_forward.2} parent=46 // loop_header_branch
                  %168 = sbr.rel (%p166) target = $region54
                $region51: #{smpl_forward.2} parent=46 // loop_body
                  %v172 = vld [vmem:[%s170] sm:$0xff]
                  %173 = vst [vmem:[%s171] sm:$0xff] %v172
                  %v174 = vld [vmem:[%s170 + $0x10] sm:$0xff]
                  %175 = vst [vmem:[%s171 + $0x8] sm:$0xff] %v174
                  %v176 = vld [vmem:[%s170 + $0x20] sm:$0xff]
                  %177 = vst [vmem:[%s171 + $0x10] sm:$0xff] %v176
                  %v178 = vld [vmem:[%s170 + $0x30] sm:$0xff]
                  %179 = vst [vmem:[%s171 + $0x18] sm:$0xff] %v178
                $region52: #{smpl_forward.2} parent=46 // loop_footer
                  %s169 = sadd.s32 1, %s165
                $region53: #{smpl_forward.2} parent=46 // loop_footer_branch
                  %164 = sbr.rel target = $region49
                $region54: #{smpl_forward.2} parent=46 // loop_exit
                  _
              $region47: #{smpl_forward.2} parent=31 // pred_fallthru
                _
              // Predicated region
              $region55: #{smpl_forward.2} parent=31 // pred_check
                _
              $region56: #{smpl_forward.2} parent=31 // pred_check_branch
                %181 = sbr.rel target = $region58
              $region57: #{smpl_forward.2} parent=31 // pred_region
                _
              $region58: #{smpl_forward.2} parent=31 // pred_fallthru
                _
            $region32: #{smpl_forward.2} parent=27 // pred_fallthru
              _
            // Predicated region
            $region33: #{smpl_forward.2} parent=27 // pred_check
              _
            $region34: #{smpl_forward.2} parent=27 // pred_check_branch
              %144 = sbr.rel target = $region36
            $region35: #{smpl_forward.2} parent=27 // pred_region
              loop: start=0, step=1, limit=1
              $region37: #{smpl_forward.2} parent=35 // loop_pre_header
                _
              $region38: #{smpl_forward.2} parent=35 // loop_header
                %s147 = sphi 0, %s151
                %p148 = scmp.ge.s32.totalorder %s147, 1
                %s152 = sphi %s138, %s138
                %s153 = sphi %s136, %s136
              $region39: #{smpl_forward.2} parent=35 // loop_header_branch
                %150 = sbr.rel (%p148) target = $region43
              $region40: #{smpl_forward.2} parent=35 // loop_body
                %v154 = vld [vmem:[%s152] sm:$0xff]
                %155 = vst [vmem:[%s153] sm:$0xff] %v154
                %v156 = vld [vmem:[%s152 + $0x10] sm:$0xff]
                %157 = vst [vmem:[%s153 + $0x8] sm:$0xff] %v156
                %v158 = vld [vmem:[%s152 + $0x20] sm:$0xff]
                %159 = vst [vmem:[%s153 + $0x10] sm:$0xff] %v158
                %v160 = vld [vmem:[%s152 + $0x30] sm:$0xff]
                %161 = vst [vmem:[%s153 + $0x18] sm:$0xff] %v160
              $region41: #{smpl_forward.2} parent=35 // loop_footer
                %s151 = sadd.s32 1, %s147
              $region42: #{smpl_forward.2} parent=35 // loop_footer_branch
                %146 = sbr.rel target = $region38
              $region43: #{smpl_forward.2} parent=35 // loop_exit
                _
            $region36: #{smpl_forward.2} parent=27 // pred_fallthru
              _
          $region28: #{smpl_forward.2} parent=23 // pred_fallthru
            _
          %182 = vnop
        $region24: #{smpl_forward.2} parent=19 // pred_fallthru
          _
        // Predicated region
        $region59: #{smpl_forward.2} parent=19 // pred_check
          %p183 = pneg %p76
        $region60: #{smpl_forward.2} parent=19 // pred_check_branch
          %185 = sbr.rel (%p183) target = $region62
        $region61: #{smpl_forward.2} parent=19 // pred_region
          %p186 = scmp.lt.s32.totalorder %s9, 1
          %s187 = scalar_select %p186, %s9, 1
          %s188 = smul.addr %s187, 4
          %s189 = scalar_lea.vmem %s2, %s188
        $region62: #{smpl_forward.2} parent=19 // pred_fallthru
          _
      $region20: #{smpl_forward.2} parent=5 // pred_fallthru
        _
      %p190 = scmp.le.s32.totalorder 1, %s9
      %p191 = scmp.lt.s32.totalorder %s9, 3
      %p192 = pnand %p190, %p191
      %p193 = pneg %p192
      // Predicated region
      $region63: #{smpl_forward.2} parent=5 // pred_check
        _
      $region64: #{smpl_forward.2} parent=5 // pred_check_branch
        %195 = sbr.rel (%p192) target = $region66
      $region65: #{smpl_forward.2} parent=5 // pred_region
        %s196 = ssub.s32 %s9, 1
        %s197 = sand.u32 %s22, 1
        %s198 = sand.u32 %s22, 1
        %s199 = smul.addr %s198, 32
        %s200 = scalar_lea.vmem [#allocation2], %s199
        // Predicated region
        $region67: #{smpl_forward.2} parent=65 // pred_check
          %p201 = pneg %p35
        $region68: #{smpl_forward.2} parent=65 // pred_check_branch
          %203 = sbr.rel (%p201) target = $region70
        $region69: #{smpl_forward.2} parent=65 // pred_region
          _
        $region70: #{smpl_forward.2} parent=65 // pred_fallthru
          _
        %s204 = sand.u32 %s22, 1
        %s205 = sand.u32 %s22, 1
        %s206 = smul.addr %s205, 32
        %s207 = scalar_lea.vmem [#allocation2], %s206
        %p208 = pneg %p35
        %p209 = pneg %p32
        %p210 = pneg %p56
        %p211 = pneg %p53
        %p212 = scmp.lt.s32.totalorder %s14, 1
        %s213 = scalar_select %p212, %s14, 1
        %s214 = smul.addr %s213, 4
        %s215 = scalar_lea.vmem %s2, %s214
        %p216 = pneg %p82
        %p217 = pneg %p79
        %p218 = pneg %p108
        %p219 = pneg %p105
        %p220 = scmp.lt.s32.totalorder %s14, 1
        %s221 = scalar_select %p220, %s14, 1
        %s222 = smul.addr %s221, 4
        %s223 = scalar_lea.vmem %s3, %s222
        %p224 = scmp.lt.s32.totalorder %s14, 1
        %s225 = scalar_select %p224, %s14, 1
        %s226 = smul.addr %s225, 4
        %s227 = scalar_lea.vmem %s2, %s226
        %p228 = scmp.lt.s32.totalorder %s14, 1
        %s229 = scalar_select %p228, %s14, 1
        %s230 = smul.addr %s229, 4
        %s231 = scalar_lea.vmem %s3, %s230
        %v232 = vld [vmem:[%s1] sm:$0xff]
        %v233 = vld [vmem:[%s1 + $0x8] sm:$0xff]
        %v234 = vld [vmem:[%s200] sm:$0xff]
        %v235 = vld [vmem:[%s200 + $0x8] sm:$0xff]
        %v236 = vld [vmem:[%s200 + $0x10] sm:$0xff]
        %v237 = vld [vmem:[%s200 + $0x18] sm:$0xff]
        %vm238 = vcmask 261120
        %v240 = vsel %vm238, %v232, 0
        %v243 = vsel %vm238, %v233, 0
        %245 = vmatprep.subr.mxu0 0.0
        %246 = vmatpush1.msra.mxu0 %v234
        %247 = vmatprep.subr.mxu0 0.0
        %248 = vmatpush1.msra.mxu0 %v235
        %249 = vmatprep.subr.mxu0 0.0
        %250 = vmatpush1.msra.mxu0 %v236
        %251 = vmatprep.subr.mxu0 0.0
        %252 = vmatpush1.msra.mxu0 %v237
        %253 = vmatprep.subr.mxu0 0.0
        %254 = vmatpush1.msra.mxu0 0.0
        %255 = vmatprep.subr.mxu0 0.0
        %256 = vmatpush1.msra.mxu0 0.0
        %257 = vmatprep.subr.mxu0 0.0
        %258 = vmatpush1.msra.mxu0 0.0
        %259 = vmatprep.subr.mxu0 0.0
        %260 = vmatpush1.msra.mxu0 0.0
        %261 = vmatprep.subr.mxu0 0.0
        %262 = vmatpush1.msra.mxu0 0.0
        %263 = vmatprep.subr.mxu0 0.0
        %264 = vmatpush1.msra.mxu0 0.0
        %265 = vmatprep.subr.mxu0 0.0
        %266 = vmatpush1.msra.mxu0 0.0
        %267 = vmatprep.subr.mxu0 0.0
        %268 = vmatpush1.msra.mxu0 0.0
        %269 = vmatprep.subr.mxu0 0.0
        %270 = vmatpush1.msra.mxu0 0.0
        %271 = vmatprep.subr.mxu0 0.0
        %272 = vmatpush1.msra.mxu0 0.0
        %273 = vmatprep.subr.mxu0 0.0
        %274 = vmatpush1.msra.mxu0 0.0
        %275 = vmatprep.subr.mxu0 0.0
        %276 = vmatpush1.msra.mxu0 0.0
        %277 = vmatprep.subr.mxu0 0.0
        %278 = vmatpush1.msra.mxu0 0.0
        %279 = vmatprep.subr.mxu0 0.0
        %280 = vmatpush1.msra.mxu0 0.0
        %281 = vmatprep.subr.mxu0 0.0
        %282 = vmatpush1.msra.mxu0 0.0
        %283 = vmatprep.subr.mxu0 0.0
        %284 = vmatpush1.msra.mxu0 0.0
        %285 = vmatprep.subr.mxu0 0.0
        %286 = vmatpush1.msra.mxu0 0.0
        %287 = vmatprep.subr.mxu0 0.0
        %288 = vmatpush1.msra.mxu0 0.0
        %289 = vmatprep.subr.mxu0 0.0
        %290 = vmatpush1.msra.mxu0 0.0
        %291 = vmatprep.subr.mxu0 0.0
        %292 = vmatpush1.msra.mxu0 0.0
        %293 = vmatprep.subr.mxu0 0.0
        %294 = vmatpush1.msra.mxu0 0.0
        %295 = vmatprep.subr.mxu0 0.0
        %296 = vmatpush1.msra.mxu0 0.0
        %297 = vmatprep.subr.mxu0 0.0
        %298 = vmatpush1.msra.mxu0 0.0
        %299 = vmatprep.subr.mxu0 0.0
        %300 = vmatpush1.msra.mxu0 0.0
        %301 = vmatprep.subr.mxu0 0.0
        %302 = vmatpush1.msra.mxu0 0.0
        %303 = vmatprep.subr.mxu0 0.0
        %304 = vmatpush1.msra.mxu0 0.0
        %305 = vmatprep.subr.mxu0 0.0
        %306 = vmatpush1.msra.mxu0 0.0
        %307 = vmatprep.subr.mxu0 0.0
        %308 = vmatpush1.msra.mxu0 0.0
        %309 = vmatprep.mubr.f32.mxu0 0.0
        %310 = vmatmul.mubr.f32.gmra.mrb[0].mxu0 %v240
        %v311 = vpop.f32.mrb[0].mxu0
        %v312 = vadd.f32 0.0, %v311
        %v313 = vpop.f32.mrb[0].mxu0
        %314 = vmatprep.mubr.f32.mxu0 0.0
        %315 = vmatmul.mubr.f32.gmra.mrb[0].mxu0 %v243
        %v316 = vpop.f32.mrb[0].mxu0
        %v317 = vadd.f32 0.0, %v316
        %v318 = vpop.f32.mrb[0].mxu0
        %319 = vdwg.mxu0
        %v320 = vld [vmem:[%s227] sm:$0x7]
        %v321 = vmul.f32 %v312, %v320
        %v323 = vrot.slane %v321, 1
        %v325 = vadd.f32 %v321, %v323
        %v326 = vrot.slane %v321, 2
        %v328 = vadd.f32 %v325, %v326
        %v330 = vrot.slane %v312, 3
        %v332 = vadd.f32 %v328, %v330
        %v334 = vrot.slane %v320, 4
        %v336 = vmul.f32 %v312, %v334
        %v338 = vrot.slane %v336, 1
        %v340 = vadd.f32 %v336, %v338
        %v341 = vrot.slane %v336, 2
        %v343 = vadd.f32 %v340, %v341
        %v344 = vadd.f32 %v343, %v330
        %v345 = vmul.f32 %v317, %v320
        %v347 = vrot.slane %v345, 1
        %v349 = vadd.f32 %v345, %v347
        %v350 = vrot.slane %v345, 2
        %v352 = vadd.f32 %v349, %v350
        %v354 = vrot.slane %v317, 3
        %v356 = vadd.f32 %v352, %v354
        %v358 = vrot.slane %v344, 3
        %v361 = vrot.slane %v356, 6
        %vm363 = vcmask 1040384
        %v364 = vsel %vm363, %v332, %v358
        %vm365 = vcmask 1041408
        %v366 = vsel %vm365, %v364, %v361
        %367 = vst [vmem:[%s231] sm:$0x7] %v366
        %p368 = scmp.lt.s32.totalorder %s14, 1
        %s369 = scalar_select %p368, %s14, 1
        %s370 = smul.addr %s369, 4
        %s371 = scalar_lea.vmem %s3, %s370
        // Predicated region
        $region71: #{smpl_forward.2} parent=65 // pred_check
          %p372 = pneg %p105
        $region72: #{smpl_forward.2} parent=65 // pred_check_branch
          %374 = sbr.rel (%p372) target = $region74
        $region73: #{smpl_forward.2} parent=65 // pred_region
          _
        $region74: #{smpl_forward.2} parent=65 // pred_fallthru
          _
      $region66: #{smpl_forward.2} parent=5 // pred_fallthru
        _
      %p375 = scmp.le.s32.totalorder 2, %s9
      // Predicated region
      $region75: #{smpl_forward.2} parent=5 // pred_check
        %p376 = pneg %p375
      $region76: #{smpl_forward.2} parent=5 // pred_check_branch
        %378 = sbr.rel (%p376) target = $region78
      $region77: #{smpl_forward.2} parent=5 // pred_region
        %s379 = ssub.s32 %s9, 2
        // Predicated region
        $region79: #{smpl_forward.2} parent=77 // pred_check
          %p380 = pneg %p111
        $region80: #{smpl_forward.2} parent=77 // pred_check_branch
          %382 = sbr.rel (%p380) target = $region82
        $region81: #{smpl_forward.2} parent=77 // pred_region
          %p383 = scmp.lt.s32.totalorder %s15, 1
          %s384 = scalar_select %p383, %s15, 1
          %s385 = smul.addr %s384, 4
          %s386 = scalar_lea.vmem %s3, %s385
        $region82: #{smpl_forward.2} parent=77 // pred_fallthru
          _
      $region78: #{smpl_forward.2} parent=5 // pred_fallthru
        _
    $region6: #{smpl_forward.2} parent=1 // loop_footer
      %s13 = sadd.s32 1, %s9
    $region7: #{smpl_forward.2} parent=1 // loop_footer_branch
      %8 = sbr.rel target = $region3
    $region8: #{smpl_forward.2} parent=1 // loop_exit
      _

// kernel: smpl_forward.3
$region0: #{smpl_forward.3}
  #allocation0 [shape = 'u32[]', space=smem, size = 0x4, offset = 0x4, fixed_abs, tag = 'smem constant byte address 0x4 - core index']
  #allocation1 [shape = 'u32[144,128]{1,0:T(1,128)}', space=vmem, size = 0x12000, scoped, tag = 'internal scratch']
  %s0 = inlined_call_operand.vmem [shape: f32[9,256], index: 0, kind: input, shape index: {}]
  %s1 = inlined_call_operand.vmem [shape: f32[2,256], index: 1, kind: input, shape index: {}]
  %s2 = inlined_call_operand.vmem [shape: f32[2,256], index: 2, kind: input, shape index: {}]
  %s3 = inlined_call_operand.vmem [shape: f32[1,256], index: 3, kind: input, shape index: {}]
  %s4 = inlined_call_operand.vmem [shape: f32[16,256], index: 4, kind: output, shape index: {}]
  %s5 = sld [smem:[#allocation0]]
  $region121: #{smpl_forward.3} parent=0
    _
  %s7 = ssub.s32 1, %s5
  %s8 = scalar_select 0, %s7, %s5
  $region1: #{smpl_forward.3} parent=0
    #allocation2 [shape = 'u8[16384]{0}', space=vmem, size = 0x4000, scoped, tag = 'input window, operand 0']
    #allocation3 [shape = 'u8[16384]{0}', space=vmem, size = 0x4000, scoped, tag = 'output window, operand 0']
    loop: start=0, step=1, limit=4
    $region2: #{smpl_forward.3} parent=1 // loop_pre_header
      _
    $region3: #{smpl_forward.3} parent=1 // loop_header
      %s10 = sphi 0, %s14
      %p11 = scmp.ge.s32.totalorder %s10, 4
      %s20 = sphi 0, %s22
      %s23 = sphi 0, %s20
      %s24 = sphi 0, %s23
      %s40 = sphi 0, %s24
      %s46 = sphi 0, %s48
      %s49 = sphi 0, %s46
      %s50 = sphi 0, %s49
      %s66 = sphi 0, %s50
      %s72 = sphi 0, %s74
      %s75 = sphi 0, %s72
      %s76 = sphi 0, %s75
      %s92 = sphi 0, %s76
      %s98 = sphi 0, %s100
      %s101 = sphi 0, %s98
      %s102 = sphi 0, %s101
      %s118 = sphi 0, %s102
      %s124 = sphi 0, %s126
      %s127 = sphi 0, %s124
      %s128 = sphi 0, %s127
      %s144 = sphi 0, %s128
    $region4: #{smpl_forward.3} parent=1 // loop_header_branch
      %13 = sbr.rel (%p11) target = $region8
    $region5: #{smpl_forward.3} parent=1 // loop_body
      %s15 = ssub.s32 %s10, 1
      %s16 = ssub.s32 %s10, 2
      %s17 = sadd.s32 %s10, 1
      %s18 = ssub.s32 %s10, %s17
      %p19 = scmp.eq.s32.totalorder %s18, 0
      %s21 = sadd.s32 %s20, 1
      %s22 = scalar_select %p19, %s20, %s21
      %p25 = pneg %p19
      %p26 = scmp.eq.s32.totalorder %s10, 1
      %p27 = por %p25, %p26
      %p28 = scmp.ne.s32.totalorder %s20, %s23
      %p29 = scmp.eq.s32.totalorder %s10, 0
      %p30 = por %p28, %p29
      %p31 = scmp.ne.s32.totalorder %s20, %s23
      %p32 = scmp.eq.s32.totalorder %s15, 1
      %p33 = por %p31, %p32
      %p34 = scmp.ne.s32.totalorder %s23, %s24
      %p35 = scmp.eq.s32.totalorder %s15, 0
      %p36 = por %p34, %p35
      %p37 = scmp.ne.s32.totalorder %s23, %s24
      %p38 = scmp.eq.s32.totalorder %s16, 1
      %p39 = por %p37, %p38
      %p41 = scmp.ne.s32.totalorder %s24, %s40
      %p42 = scmp.eq.s32.totalorder %s16, 0
      %p43 = por %p41, %p42
      %s44 = ssub.s32 %s10, %s17
      %p45 = scmp.eq.s32.totalorder %s44, 0
      %s47 = sadd.s32 %s46, 1
      %s48 = scalar_select %p45, %s46, %s47
      %p51 = pneg %p45
      %p52 = scmp.eq.s32.totalorder %s10, 1
      %p53 = por %p51, %p52
      %p54 = scmp.ne.s32.totalorder %s46, %s49
      %p55 = scmp.eq.s32.totalorder %s10, 0
      %p56 = por %p54, %p55
      %p57 = scmp.ne.s32.totalorder %s46, %s49
      %p58 = scmp.eq.s32.totalorder %s15, 1
      %p59 = por %p57, %p58
      %p60 = scmp.ne.s32.totalorder %s49, %s50
      %p61 = scmp.eq.s32.totalorder %s15, 0
      %p62 = por %p60, %p61
      %p63 = scmp.ne.s32.totalorder %s49, %s50
      %p64 = scmp.eq.s32.totalorder %s16, 1
      %p65 = por %p63, %p64
      %p67 = scmp.ne.s32.totalorder %s50, %s66
      %p68 = scmp.eq.s32.totalorder %s16, 0
      %p69 = por %p67, %p68
      %s70 = ssub.s32 %s10, %s17
      %p71 = scmp.eq.s32.totalorder %s70, 0
      %s73 = sadd.s32 %s72, 1
      %s74 = scalar_select %p71, %s72, %s73
      %p77 = pneg %p71
      %p78 = scmp.eq.s32.totalorder %s10, 1
      %p79 = por %p77, %p78
      %p80 = scmp.ne.s32.totalorder %s72, %s75
      %p81 = scmp.eq.s32.totalorder %s10, 0
      %p82 = por %p80, %p81
      %p83 = scmp.ne.s32.totalorder %s72, %s75
      %p84 = scmp.eq.s32.totalorder %s15, 1
      %p85 = por %p83, %p84
      %p86 = scmp.ne.s32.totalorder %s75, %s76
      %p87 = scmp.eq.s32.totalorder %s15, 0
      %p88 = por %p86, %p87
      %p89 = scmp.ne.s32.totalorder %s75, %s76
      %p90 = scmp.eq.s32.totalorder %s16, 1
      %p91 = por %p89, %p90
      %p93 = scmp.ne.s32.totalorder %s76, %s92
      %p94 = scmp.eq.s32.totalorder %s16, 0
      %p95 = por %p93, %p94
      %s96 = ssub.s32 %s10, %s17
      %p97 = scmp.eq.s32.totalorder %s96, 0
      %s99 = sadd.s32 %s98, 1
      %s100 = scalar_select %p97, %s98, %s99
      %p103 = pneg %p97
      %p104 = scmp.eq.s32.totalorder %s10, 1
      %p105 = por %p103, %p104
      %p106 = scmp.ne.s32.totalorder %s98, %s101
      %p107 = scmp.eq.s32.totalorder %s10, 0
      %p108 = por %p106, %p107
      %p109 = scmp.ne.s32.totalorder %s98, %s101
      %p110 = scmp.eq.s32.totalorder %s15, 1
      %p111 = por %p109, %p110
      %p112 = scmp.ne.s32.totalorder %s101, %s102
      %p113 = scmp.eq.s32.totalorder %s15, 0
      %p114 = por %p112, %p113
      %p115 = scmp.ne.s32.totalorder %s101, %s102
      %p116 = scmp.eq.s32.totalorder %s16, 1
      %p117 = por %p115, %p116
      %p119 = scmp.ne.s32.totalorder %s102, %s118
      %p120 = scmp.eq.s32.totalorder %s16, 0
      %p121 = por %p119, %p120
      %s122 = ssub.s32 %s10, %s17
      %p123 = scmp.eq.s32.totalorder %s122, 0
      %s125 = sadd.s32 %s124, 1
      %s126 = scalar_select %p123, %s124, %s125
      %p129 = pneg %p123
      %p130 = scmp.eq.s32.totalorder %s10, 1
      %p131 = por %p129, %p130
      %p132 = scmp.ne.s32.totalorder %s124, %s127
      %p133 = scmp.eq.s32.totalorder %s10, 0
      %p134 = por %p132, %p133
      %p135 = scmp.ne.s32.totalorder %s124, %s127
      %p136 = scmp.eq.s32.totalorder %s15, 1
      %p137 = por %p135, %p136
      %p138 = scmp.ne.s32.totalorder %s127, %s128
      %p139 = scmp.eq.s32.totalorder %s15, 0
      %p140 = por %p138, %p139
      %p141 = scmp.ne.s32.totalorder %s127, %s128
      %p142 = scmp.eq.s32.totalorder %s16, 1
      %p143 = por %p141, %p142
      %p145 = scmp.ne.s32.totalorder %s128, %s144
      %p146 = scmp.eq.s32.totalorder %s16, 0
      %p147 = por %p145, %p146
      %p148 = scmp.le.s32.totalorder 1, %s10
      %p149 = scmp.lt.s32.totalorder %s10, 3
      %p150 = pnand %p148, %p149
      %p151 = pneg %p150
      // Predicated region
      $region9: #{smpl_forward.3} parent=5 // pred_check
        _
      $region10: #{smpl_forward.3} parent=5 // pred_check_branch
        %153 = sbr.rel (%p150) target = $region12
      $region11: #{smpl_forward.3} parent=5 // pred_region
        %s154 = ssub.s32 %s10, 1
      $region12: #{smpl_forward.3} parent=5 // pred_fallthru
        _
      %p155 = scmp.lt.s32.totalorder %s10, 2
      // Predicated region
      $region13: #{smpl_forward.3} parent=5 // pred_check
        %p156 = pneg %p155
      $region14: #{smpl_forward.3} parent=5 // pred_check_branch
        %158 = sbr.rel (%p156) target = $region16
      $region15: #{smpl_forward.3} parent=5 // pred_region
        // Predicated region
        $region17: #{smpl_forward.3} parent=15 // pred_check
          %p159 = pneg %p30
        $region18: #{smpl_forward.3} parent=15 // pred_check_branch
          %161 = sbr.rel (%p159) target = $region20
        $region19: #{smpl_forward.3} parent=15 // pred_region
          %s162 = sand.u32 %s20, 1
          %s163 = sand.u32 %s20, 1
          %s164 = smul.addr %s163, 16
          %s165 = scalar_lea.vmem [#allocation2], %s164
          %s166 = smul.addr %s10, 8
          %s167 = scalar_lea.vmem %s0, %s166
          // Predicated region
          $region21: #{smpl_forward.3} parent=19 // pred_check
            _
          $region22: #{smpl_forward.3} parent=19 // pred_check_branch
            %169 = sbr.rel (0) target = $region24
          $region23: #{smpl_forward.3} parent=19 // pred_region
            // Predicated region
            $region25: #{smpl_forward.3} parent=23 // pred_check
              _
            $region26: #{smpl_forward.3} parent=23 // pred_check_branch
              %171 = sbr.rel (0) target = $region28
            $region27: #{smpl_forward.3} parent=23 // pred_region
              // Predicated region
              $region40: #{smpl_forward.3} parent=27 // pred_check
                _
              $region41: #{smpl_forward.3} parent=27 // pred_check_branch
                %188 = sbr.rel (0) target = $region43
              $region42: #{smpl_forward.3} parent=27 // pred_region
                loop: start=0, step=1, limit=1
                $region44: #{smpl_forward.3} parent=42 // loop_pre_header
                  _
                $region45: #{smpl_forward.3} parent=42 // loop_header
                  %s190 = sphi 0, %s194
                  %p191 = scmp.ge.s32.totalorder %s190, 1
                  %s195 = sphi %s167, %s167
                  %s196 = sphi %s165, %s165
                $region46: #{smpl_forward.3} parent=42 // loop_header_branch
                  %193 = sbr.rel (%p191) target = $region50
                $region47: #{smpl_forward.3} parent=42 // loop_body
                  %v197 = vld [vmem:[%s195] sm:$0xff]
                  %198 = vst [vmem:[%s196] sm:$0xff] %v197
                  %v199 = vld [vmem:[%s195 + $0x10] sm:$0xff]
                  %200 = vst [vmem:[%s196 + $0x8] sm:$0xff] %v199
                $region48: #{smpl_forward.3} parent=42 // loop_footer
                  %s194 = sadd.s32 1, %s190
                $region49: #{smpl_forward.3} parent=42 // loop_footer_branch
                  %189 = sbr.rel target = $region45
                $region50: #{smpl_forward.3} parent=42 // loop_exit
                  _
              $region43: #{smpl_forward.3} parent=27 // pred_fallthru
                _
              // Predicated region
              $region51: #{smpl_forward.3} parent=27 // pred_check
                _
              $region52: #{smpl_forward.3} parent=27 // pred_check_branch
                %202 = sbr.rel target = $region54
              $region53: #{smpl_forward.3} parent=27 // pred_region
                _
              $region54: #{smpl_forward.3} parent=27 // pred_fallthru
                _
            $region28: #{smpl_forward.3} parent=23 // pred_fallthru
              _
            // Predicated region
            $region29: #{smpl_forward.3} parent=23 // pred_check
              _
            $region30: #{smpl_forward.3} parent=23 // pred_check_branch
              %173 = sbr.rel target = $region32
            $region31: #{smpl_forward.3} parent=23 // pred_region
              loop: start=0, step=1, limit=1
              $region33: #{smpl_forward.3} parent=31 // loop_pre_header
                _
              $region34: #{smpl_forward.3} parent=31 // loop_header
                %s176 = sphi 0, %s180
                %p177 = scmp.ge.s32.totalorder %s176, 1
                %s181 = sphi %s167, %s167
                %s182 = sphi %s165, %s165
              $region35: #{smpl_forward.3} parent=31 // loop_header_branch
                %179 = sbr.rel (%p177) target = $region39
              $region36: #{smpl_forward.3} parent=31 // loop_body
                %v183 = vld [vmem:[%s181] sm:$0xff]
                %184 = vst [vmem:[%s182] sm:$0xff] %v183
                %v185 = vld [vmem:[%s181 + $0x10] sm:$0xff]
                %186 = vst [vmem:[%s182 + $0x8] sm:$0xff] %v185
              $region37: #{smpl_forward.3} parent=31 // loop_footer
                %s180 = sadd.s32 1, %s176
              $region38: #{smpl_forward.3} parent=31 // loop_footer_branch
                %175 = sbr.rel target = $region34
              $region39: #{smpl_forward.3} parent=31 // loop_exit
                _
            $region32: #{smpl_forward.3} parent=23 // pred_fallthru
              _
          $region24: #{smpl_forward.3} parent=19 // pred_fallthru
            _
          %203 = vnop
        $region20: #{smpl_forward.3} parent=15 // pred_fallthru
          _
        // Predicated region
        $region55: #{smpl_forward.3} parent=15 // pred_check
          %p204 = pneg %p56
        $region56: #{smpl_forward.3} parent=15 // pred_check_branch
          %206 = sbr.rel (%p204) target = $region58
        $region57: #{smpl_forward.3} parent=15 // pred_region
          %p207 = scmp.lt.s32.totalorder %s10, 1
          %s208 = scalar_select %p207, %s10, 1
          %s209 = smul.addr %s208, 2
          %s210 = scalar_lea.vmem %s1, %s209
        $region58: #{smpl_forward.3} parent=15 // pred_fallthru
          _
        // Predicated region
        $region59: #{smpl_forward.3} parent=15 // pred_check
          %p211 = pneg %p82
        $region60: #{smpl_forward.3} parent=15 // pred_check_branch
          %213 = sbr.rel (%p211) target = $region62
        $region61: #{smpl_forward.3} parent=15 // pred_region
          %p214 = scmp.lt.s32.totalorder %s10, 1
          %s215 = scalar_select %p214, %s10, 1
          %s216 = smul.addr %s215, 2
          %s217 = scalar_lea.vmem %s2, %s216
        $region62: #{smpl_forward.3} parent=15 // pred_fallthru
          _
        // Predicated region
        $region63: #{smpl_forward.3} parent=15 // pred_check
          %p218 = pneg %p108
        $region64: #{smpl_forward.3} parent=15 // pred_check_branch
          %220 = sbr.rel (%p218) target = $region66
        $region65: #{smpl_forward.3} parent=15 // pred_region
          %p221 = scmp.lt.s32.totalorder %s10, 1
          %s222 = scalar_select %p221, %s10, 1
          %s223 = scalar_lea.vmem %s3, %s222
        $region66: #{smpl_forward.3} parent=15 // pred_fallthru
          _
      $region16: #{smpl_forward.3} parent=5 // pred_fallthru
        _
      %p224 = scmp.le.s32.totalorder 1, %s10
      %p225 = scmp.lt.s32.totalorder %s10, 3
      %p226 = pnand %p224, %p225
      %p227 = pneg %p226
      // Predicated region
      $region67: #{smpl_forward.3} parent=5 // pred_check
        _
      $region68: #{smpl_forward.3} parent=5 // pred_check_branch
        %229 = sbr.rel (%p226) target = $region70
      $region69: #{smpl_forward.3} parent=5 // pred_region
        %s230 = ssub.s32 %s10, 1
        %s231 = sand.u32 %s23, 1
        %s232 = sand.u32 %s23, 1
        %s233 = smul.addr %s232, 16
        %s234 = scalar_lea.vmem [#allocation2], %s233
        // Predicated region
        $region71: #{smpl_forward.3} parent=69 // pred_check
          %p235 = pneg %p36
        $region72: #{smpl_forward.3} parent=69 // pred_check_branch
          %237 = sbr.rel (%p235) target = $region74
        $region73: #{smpl_forward.3} parent=69 // pred_region
          _
        $region74: #{smpl_forward.3} parent=69 // pred_fallthru
          _
        %s238 = sand.u32 %s23, 1
        %s239 = sand.u32 %s23, 1
        %s240 = smul.addr %s239, 16
        %s241 = scalar_lea.vmem [#allocation2], %s240
        %p242 = pneg %p36
        %p243 = pneg %p33
        %p244 = scmp.lt.s32.totalorder %s15, 1
        %s245 = scalar_select %p244, %s15, 1
        %s246 = smul.addr %s245, 2
        %s247 = scalar_lea.vmem %s1, %s246
        %p248 = pneg %p62
        %p249 = pneg %p59
        %p250 = scmp.lt.s32.totalorder %s15, 1
        %s251 = scalar_select %p250, %s15, 1
        %s252 = smul.addr %s251, 2
        %s253 = scalar_lea.vmem %s2, %s252
        %p254 = pneg %p88
        %p255 = pneg %p85
        %p256 = scmp.lt.s32.totalorder %s15, 1
        %s257 = scalar_select %p256, %s15, 1
        %s258 = scalar_lea.vmem %s3, %s257
        %p259 = pneg %p114
        %p260 = pneg %p111
        %p261 = pneg %p140
        %p262 = pneg %p137
        %s263 = sand.u32 %s127, 1
        %s264 = sand.u32 %s127, 1
        %s265 = smul.addr %s264, 16
        %s266 = scalar_lea.vmem [#allocation3], %s265
        %p267 = scmp.lt.s32.totalorder %s15, 1
        %s268 = scalar_select %p267, %s15, 1
        %s269 = smul.addr %s268, 2
        %s270 = scalar_lea.vmem %s1, %s269
        %p271 = scmp.lt.s32.totalorder %s15, 1
        %s272 = scalar_select %p271, %s15, 1
        %s273 = smul.addr %s272, 2
        %s274 = scalar_lea.vmem %s2, %s273
        %p275 = scmp.lt.s32.totalorder %s15, 1
        %s276 = scalar_select %p275, %s15, 1
        %s277 = scalar_lea.vmem %s3, %s276
        %v278 = vld [vmem:[%s234] sm:$0xff]
        %v279 = vld [vmem:[%s234 + $0x8] sm:$0x1]
        %v281 = vrot.slane %v278, 3
        %v283 = vadd.f32 %v278, %v281
        %v284 = vrot.slane %v278, 6
        %v286 = vadd.f32 %v283, %v284
        %v287 = vmul.f32 %v286, 0.33333334
        %v289 = vrot.slane %v279, 6
        %v291 = vadd.f32 %v283, %v289
        %v292 = vmul.f32 %v291, 0.33333334
        %v293 = vrot.slane %v278, 5
        %v295 = vsub.f32 %v278, %v293
        %v296 = vrot.slane %v278, 2
        %v298 = vsub.f32 %v278, %v296
        %v299 = vsub.f32 %v279, %v296
        %v301 = vrot.slane %v299, 4
        %v303 = vmul.f32 %v295, %v301
        %v305 = vrot.slane %v298, 2
        %v307 = vmul.f32 %v295, %v305
        %v309 = vrot.slane %v307, 1
        %v311 = vsub.f32 %v303, %v309
        %v312 = vrot.slane %v298, 1
        %v314 = vmul.f32 %v295, %v312
        %v315 = vrot.slane %v299, 5
        %v317 = vmul.f32 %v295, %v315
        %v319 = vrot.slane %v317, 6
        %v321 = vsub.f32 %v314, %v319
        %v322 = vrot.slane %v298, 4
        %v324 = vmul.f32 %v295, %v322
        %v325 = vsub.f32 %v324, %v309
        %v326 = vmul.f32 %v311, %v311
        %v327 = vmul.f32 %v321, %v321
        %v329 = vrot.slane %v327, 1
        %v331 = vadd.f32 %v326, %v329
        %v332 = vmul.f32 %v325, %v325
        %v334 = vrot.slane %v332, 7
        %v336 = vadd.f32 %v331, %v334
        %v337 = vmax.f32 %v336, 1e-12
        %v338 = vrsqrt.pop %v337
        %v339 = vmul.f32 %v311, %v338
        %v341 = vrot.slane %v338, 7
        %v343 = vmul.f32 %v321, %v341
        %v344 = vrot.slane %v338, 1
        %v346 = vmul.f32 %v325, %v344
        %v347 = vsub.f32 %v278, %v281
        %v348 = vmul.f32 %v347, %v347
        %v350 = vrot.slane %v348, 1
        %v352 = vadd.f32 %v348, %v350
        %v353 = vrot.slane %v348, 2
        %v355 = vadd.f32 %v352, %v353
        %v356 = vmax.f32 %v355, 1e-24
        %v357 = vrsqrt.pop %v356
        %v358 = vmul.f32 %v347, %v357
        %v360 = vrot.slane %v357, 7
        %v362 = vmul.f32 %v347, %v360
        %v363 = vrot.slane %v357, 6
        %v365 = vmul.f32 %v347, %v363
        %v367 = vrot.slane %v365, 5
        %v369 = vmul.f32 %v343, %v367
        %v371 = vrot.slane %v362, 6
        %v373 = vmul.f32 %v346, %v371
        %v375 = vrot.slane %v373, 6
        %v377 = vsub.f32 %v369, %v375
        %v379 = vrot.slane %v358, 5
        %v381 = vmul.f32 %v346, %v379
        %v382 = vrot.slane %v365, 6
        %v384 = vmul.f32 %v339, %v382
        %v386 = vrot.slane %v384, 1
        %v388 = vsub.f32 %v381, %v386
        %v389 = vrot.slane %v362, 5
        %v391 = vmul.f32 %v339, %v389
        %v392 = vrot.slane %v358, 3
        %v394 = vmul.f32 %v343, %v392
        %v396 = vrot.slane %v394, 1
        %v398 = vsub.f32 %v391, %v396
        %v399 = vmul.f32 %v377, %v377
        %v400 = vmul.f32 %v388, %v388
        %v402 = vrot.slane %v400, 6
        %v404 = vadd.f32 %v399, %v402
        %v405 = vmul.f32 %v398, %v398
        %v407 = vrot.slane %v405, 7
        %v409 = vadd.f32 %v404, %v407
        %v410 = vmax.f32 %v409, 1e-24
        %v411 = vrsqrt.pop %v410
        %v412 = vmul.f32 %v377, %v411
        %v414 = vrot.slane %v411, 2
        %v416 = vmul.f32 %v388, %v414
        %v417 = vrot.slane %v411, 1
        %v419 = vmul.f32 %v398, %v417
        %v420 = vld [vmem:[%s270] sm:$0x3]
        %v421 = vmul.f32 %v420, %v420
        %v423 = vrot.slane %v421, 1
        %v425 = vadd.f32 %v421, %v423
        %v426 = vmax.f32 %v425, 1e-24
        %v427 = vrsqrt.pop %v426
        %v428 = vmul.f32 %v420, %v427
        %v430 = vrot.slane %v427, 7
        %v432 = vmul.f32 %v420, %v430
        %v433 = vmul.f32 %v428, %v358
        %v435 = vrot.slane %v412, 4
        %v437 = vmul.f32 %v432, %v435
        %v439 = vrot.slane %v437, 1
        %v441 = vadd.f32 %v433, %v439
        %v442 = vrot.slane %v362, 1
        %v444 = vmul.f32 %v428, %v442
        %v446 = vrot.slane %v416, 2
        %v448 = vmul.f32 %v432, %v446
        %v450 = vrot.slane %v448, 1
        %v452 = vadd.f32 %v444, %v450
        %v453 = vrot.slane %v365, 2
        %v455 = vmul.f32 %v428, %v453
        %v457 = vrot.slane %v419, 3
        %v459 = vmul.f32 %v432, %v457
        %v461 = vrot.slane %v459, 1
        %v463 = vadd.f32 %v455, %v461
        %v464 = vsub.f32 0.0, %v432
        %v465 = vrot.slane %v358, 7
        %v467 = vmul.f32 %v464, %v465
        %v468 = vrot.slane %v412, 5
        %v470 = vmul.f32 %v428, %v468
        %v472 = vrot.slane %v470, 7
        %v474 = vadd.f32 %v467, %v472
        %v475 = vmul.f32 %v464, %v362
        %v476 = vrot.slane %v416, 3
        %v478 = vmul.f32 %v428, %v476
        %v480 = vrot.slane %v478, 7
        %v482 = vadd.f32 %v475, %v480
        %v483 = vrot.slane %v365, 1
        %v485 = vmul.f32 %v464, %v483
        %v486 = vrot.slane %v419, 4
        %v488 = vmul.f32 %v428, %v486
        %v490 = vrot.slane %v488, 7
        %v492 = vadd.f32 %v485, %v490
        %v493 = vadd.f32 %v339, 1.0
        %v495 = vrot.slane %v452, 4
        %v497 = vadd.f32 %v493, %v495
        %v499 = vrot.slane %v492, 5
        %v501 = vadd.f32 %v497, %v499
        %v502 = vmax.f32 %v501, 0.0
        %v503 = vrsqrt.pop %v502
        %v504 = vmul.f32 %v502, %v503
        %vm505 = vcmp.eq.f32.partialorder %v502, inf
        %v506 = vsel %vm505, %v502, %v504
        %vm507 = vcmp.eq.f32.partialorder %v502, 0.0
        %v508 = vand.u32 %v502, 2147483648
        %v509 = vsel %vm507, %v508, %v506
        %v510 = vsub.f32 %v493, %v495
        %v511 = vsub.f32 %v510, %v499
        %v512 = vmax.f32 %v511, 0.0
        %v513 = vrsqrt.pop %v512
        %v514 = vmul.f32 %v512, %v513
        %vm515 = vcmp.eq.f32.partialorder %v512, inf
        %v516 = vsel %vm515, %v512, %v514
        %vm517 = vcmp.eq.f32.partialorder %v512, 0.0
        %v518 = vand.u32 %v512, 2147483648
        %v519 = vsel %vm517, %v518, %v516
        %v520 = vsub.f32 1.0, %v339
        %v521 = vadd.f32 %v520, %v495
        %v522 = vsub.f32 %v521, %v499
        %v523 = vmax.f32 %v522, 0.0
        %v524 = vrsqrt.pop %v523
        %v525 = vmul.f32 %v523, %v524
        %vm526 = vcmp.eq.f32.partialorder %v523, inf
        %v527 = vsel %vm526, %v523, %v525
        %vm528 = vcmp.eq.f32.partialorder %v523, 0.0
        %v529 = vand.u32 %v523, 2147483648
        %v530 = vsel %vm528, %v529, %v527
        %v531 = vsub.f32 %v520, %v495
        %v532 = vadd.f32 %v531, %v499
        %v533 = vmax.f32 %v532, 0.0
        %v534 = vrsqrt.pop %v533
        %v535 = vmul.f32 %v533, %v534
        %vm536 = vcmp.eq.f32.partialorder %v533, inf
        %v537 = vsel %vm536, %v533, %v535
        %vm538 = vcmp.eq.f32.partialorder %v533, 0.0
        %v539 = vand.u32 %v533, 2147483648
        %v540 = vsel %vm538, %v539, %v537
        %v541 = vmax.f32 %v509, 0.1
        %v542 = vrcp.pop %v541
        %v543 = vmul.f32 %v542, 0.5
        %v544 = vmax.f32 %v519, 0.1
        %v545 = vrcp.pop %v544
        %v546 = vmul.f32 %v545, 0.5
        %v547 = vmax.f32 %v530, 0.1
        %v548 = vrcp.pop %v547
        %v549 = vmul.f32 %v548, 0.5
        %v550 = vmax.f32 %v540, 0.1
        %v551 = vrcp.pop %v550
        %v552 = vmul.f32 %v551, 0.5
        %v553 = vmul.f32 %v509, %v509
        %v554 = vmul.f32 %v553, %v543
        %v556 = vrot.slane %v482, 1
        %v558 = vsub.f32 %v463, %v556
        %v560 = vrot.slane %v543, 4
        %v562 = vmul.f32 %v558, %v560
        %v564 = vrot.slane %v346, 2
        %v566 = vsub.f32 %v474, %v564
        %v567 = vrot.slane %v543, 3
        %v569 = vmul.f32 %v566, %v567
        %v571 = vrot.slane %v441, 3
        %v573 = vsub.f32 %v343, %v571
        %v574 = vrot.slane %v543, 7
        %v576 = vmul.f32 %v573, %v574
        %v578 = vrot.slane %v546, 4
        %v580 = vmul.f32 %v558, %v578
        %v581 = vmul.f32 %v519, %v519
        %v582 = vmul.f32 %v581, %v546
        %v583 = vadd.f32 %v343, %v571
        %v584 = vrot.slane %v546, 7
        %v586 = vmul.f32 %v583, %v584
        %v587 = vadd.f32 %v474, %v564
        %v588 = vrot.slane %v546, 3
        %v590 = vmul.f32 %v587, %v588
        %v592 = vrot.slane %v549, 3
        %v594 = vmul.f32 %v566, %v592
        %v595 = vrot.slane %v549, 7
        %v597 = vmul.f32 %v583, %v595
        %v598 = vmul.f32 %v530, %v530
        %v599 = vmul.f32 %v598, %v549
        %v601 = vrot.slane %v463, 7
        %v603 = vadd.f32 %v482, %v601
        %v604 = vmul.f32 %v603, %v592
        %v606 = vrot.slane %v552, 7
        %v608 = vmul.f32 %v573, %v606
        %v609 = vrot.slane %v552, 3
        %v611 = vmul.f32 %v587, %v609
        %v612 = vmul.f32 %v603, %v609
        %v613 = vmul.f32 %v540, %v540
        %v614 = vmul.f32 %v613, %v552
        %v615 = vmax.f32 %v509, %v519
        %v616 = vmax.f32 %v530, %v540
        %v617 = vmax.f32 %v615, %v616
        %vm618 = vcmp.ge.f32.partialorder %v509, %v617
        %vm619 = vmxor %vm618, 1
        %vm620 = vcmp.ge.f32.partialorder %v519, %v617
        %vm621 = vmand %vm619, %vm620
        %vm622 = vmor %vm618, %vm621
        %vm623 = vmxor %vm622, 1
        %vm624 = vcmp.ge.f32.partialorder %v530, %v617
        %vm625 = vmand %vm623, %vm624
        %v627 = vrot.slane %v594, 5
        %v630 = vrot.slane %v608, 1
        %v632 = vsel %vm625, %v627, %v630
        %v634 = vrot.slane %v580, 4
        %v636 = vsel %vm621, %v634, %v632
        %v637 = vsel %vm618, %v554, %v636
        %v639 = vrot.slane %v597, 1
        %v642 = vrot.slane %v611, 5
        %v644 = vsel %vm625, %v639, %v642
        %v645 = vsel %vm621, %v582, %v644
        %v647 = vrot.slane %v562, 4
        %v649 = vsel %vm618, %v647, %v645
        %v651 = vrot.slane %v612, 5
        %v653 = vsel %vm625, %v599, %v651
        %v655 = vrot.slane %v586, 1
        %v657 = vsel %vm621, %v655, %v653
        %v659 = vrot.slane %v569, 5
        %v661 = vsel %vm618, %v659, %v657
        %v663 = vrot.slane %v604, 5
        %v665 = vsel %vm625, %v663, %v614
        %v667 = vrot.slane %v590, 5
        %v669 = vsel %vm621, %v667, %v665
        %v671 = vrot.slane %v576, 1
        %v673 = vsel %vm618, %v671, %v669
        %v674 = vmul.f32 %v637, %v637
        %v675 = vmul.f32 %v649, %v649
        %v676 = vadd.f32 %v674, %v675
        %v677 = vmul.f32 %v661, %v661
        %v678 = vadd.f32 %v676, %v677
        %v679 = vmul.f32 %v673, %v673
        %v680 = vadd.f32 %v678, %v679
        %v681 = vmax.f32 %v680, 1e-24
        %v682 = vrsqrt.pop %v681
        %v683 = vmul.f32 %v637, %v682
        %v684 = vmul.f32 %v649, %v682
        %v685 = vmul.f32 %v661, %v682
        %v686 = vmul.f32 %v673, %v682
        %v687 = vld [vmem:[%s274] sm:$0x3]
        %v688 = vmul.f32 %v687, 1.442695
        %v689 = vpow.pop %v688
        %v690 = vld [vmem:[%s277] sm:$0x1]
        %v691 = vsub.f32 0.0, %v690
        %v692 = vmul.f32 %v691, 1.442695
        %v693 = vpow.pop %v692
        %v694 = vadd.f32 %v693, 1.0
        %v695 = vrcp.pop %v694
        %v697 = vrot.slane %v339, 1
        %v700 = vrot.slane %v343, 1
        %v702 = vrot.slane %v346, 6
        %v705 = vrot.slane %v683, 6
        %v708 = vrot.slane %v684, 5
        %v711 = vrot.slane %v685, 4
        %v714 = vrot.slane %v686, 3
        %v717 = vrot.slane %v689, 5
        %v720 = vlaneseq
        %v721 = vshrl.u32 %v720, 7
        %v722 = vsub.s32 0, %v721
        %v723 = vrot.slane %v695, %v722
        %vm725 = vcmask 1040384
        %vm726 = vcmask 1041408
        %v727 = vsel %vm726, %v287, %v292
        %vm728 = vcmask 1042432
        %v729 = vsel %vm728, %v727, %v697
        %vm730 = vcmask 1043456
        %v731 = vsel %vm730, %v729, %v700
        %vm732 = vcmask 1044480
        %v733 = vsel %vm732, %v731, %v702
        %vm734 = vcmask 1045504
        %v735 = vsel %vm734, %v733, %v705
        %vm736 = vcmask 1046528
        %v737 = vsel %vm736, %v735, %v708
        %v738 = vsel %vm725, %v711, %v714
        %v739 = vsel %vm726, %v738, 0.001
        %v740 = vsel %vm728, %v739, %v717
        %v741 = vsel %vm732, %v740, %v723
        %v742 = vsel %vm734, %v741, 0.0
        %743 = vst [vmem:[%s266] sm:$0xff] %v737
        %744 = vst [vmem:[%s266 + $0x8] sm:$0xff] %v742
        %s745 = sand.u32 %s127, 1
        %s746 = sand.u32 %s127, 1
        %s747 = smul.addr %s746, 16
        %s748 = scalar_lea.vmem [#allocation3], %s747
        // Predicated region
        $region75: #{smpl_forward.3} parent=69 // pred_check
          %p749 = pneg %p137
        $region76: #{smpl_forward.3} parent=69 // pred_check_branch
          %751 = sbr.rel (%p749) target = $region78
        $region77: #{smpl_forward.3} parent=69 // pred_region
          %s752 = smul.addr %s15, 8
          %s753 = scalar_lea.vmem %s4, %s752
          // Predicated region
          $region79: #{smpl_forward.3} parent=77 // pred_check
            _
          $region80: #{smpl_forward.3} parent=77 // pred_check_branch
            %755 = sbr.rel (0) target = $region82
          $region81: #{smpl_forward.3} parent=77 // pred_region
            // Predicated region
            $region83: #{smpl_forward.3} parent=81 // pred_check
              _
            $region84: #{smpl_forward.3} parent=81 // pred_check_branch
              %757 = sbr.rel (0) target = $region86
            $region85: #{smpl_forward.3} parent=81 // pred_region
              // Predicated region
              $region98: #{smpl_forward.3} parent=85 // pred_check
                _
              $region99: #{smpl_forward.3} parent=85 // pred_check_branch
                %774 = sbr.rel (0) target = $region101
              $region100: #{smpl_forward.3} parent=85 // pred_region
                loop: start=0, step=1, limit=1
                $region102: #{smpl_forward.3} parent=100 // loop_pre_header
                  _
                $region103: #{smpl_forward.3} parent=100 // loop_header
                  %s776 = sphi 0, %s780
                  %p777 = scmp.ge.s32.totalorder %s776, 1
                  %s781 = sphi %s748, %s748
                  %s782 = sphi %s753, %s753
                $region104: #{smpl_forward.3} parent=100 // loop_header_branch
                  %779 = sbr.rel (%p777) target = $region108
                $region105: #{smpl_forward.3} parent=100 // loop_body
                  %v783 = vld [vmem:[%s781] sm:$0xff]
                  %784 = vst [vmem:[%s782] sm:$0xff] %v783
                  %v785 = vld [vmem:[%s781 + $0x8] sm:$0xff]
                  %786 = vst [vmem:[%s782 + $0x10] sm:$0xff] %v785
                $region106: #{smpl_forward.3} parent=100 // loop_footer
                  %s780 = sadd.s32 1, %s776
                $region107: #{smpl_forward.3} parent=100 // loop_footer_branch
                  %775 = sbr.rel target = $region103
                $region108: #{smpl_forward.3} parent=100 // loop_exit
                  _
              $region101: #{smpl_forward.3} parent=85 // pred_fallthru
                _
              // Predicated region
              $region109: #{smpl_forward.3} parent=85 // pred_check
                _
              $region110: #{smpl_forward.3} parent=85 // pred_check_branch
                %788 = sbr.rel target = $region112
              $region111: #{smpl_forward.3} parent=85 // pred_region
                _
              $region112: #{smpl_forward.3} parent=85 // pred_fallthru
                _
            $region86: #{smpl_forward.3} parent=81 // pred_fallthru
              _
            // Predicated region
            $region87: #{smpl_forward.3} parent=81 // pred_check
              _
            $region88: #{smpl_forward.3} parent=81 // pred_check_branch
              %759 = sbr.rel target = $region90
            $region89: #{smpl_forward.3} parent=81 // pred_region
              loop: start=0, step=1, limit=1
              $region91: #{smpl_forward.3} parent=89 // loop_pre_header
                _
              $region92: #{smpl_forward.3} parent=89 // loop_header
                %s762 = sphi 0, %s766
                %p763 = scmp.ge.s32.totalorder %s762, 1
                %s767 = sphi %s748, %s748
                %s768 = sphi %s753, %s753
              $region93: #{smpl_forward.3} parent=89 // loop_header_branch
                %765 = sbr.rel (%p763) target = $region97
              $region94: #{smpl_forward.3} parent=89 // loop_body
                %v769 = vld [vmem:[%s767] sm:$0xff]
                %770 = vst [vmem:[%s768] sm:$0xff] %v769
                %v771 = vld [vmem:[%s767 + $0x8] sm:$0xff]
                %772 = vst [vmem:[%s768 + $0x10] sm:$0xff] %v771
              $region95: #{smpl_forward.3} parent=89 // loop_footer
                %s766 = sadd.s32 1, %s762
              $region96: #{smpl_forward.3} parent=89 // loop_footer_branch
                %761 = sbr.rel target = $region92
              $region97: #{smpl_forward.3} parent=89 // loop_exit
                _
            $region90: #{smpl_forward.3} parent=81 // pred_fallthru
              _
          $region82: #{smpl_forward.3} parent=77 // pred_fallthru
            _
          %789 = vnop
        $region78: #{smpl_forward.3} parent=69 // pred_fallthru
          _
      $region70: #{smpl_forward.3} parent=5 // pred_fallthru
        _
      %p790 = scmp.le.s32.totalorder 2, %s10
      // Predicated region
      $region113: #{smpl_forward.3} parent=5 // pred_check
        %p791 = pneg %p790
      $region114: #{smpl_forward.3} parent=5 // pred_check_branch
        %793 = sbr.rel (%p791) target = $region116
      $region115: #{smpl_forward.3} parent=5 // pred_region
        %s794 = ssub.s32 %s10, 2
        // Predicated region
        $region117: #{smpl_forward.3} parent=115 // pred_check
          %p795 = pneg %p143
        $region118: #{smpl_forward.3} parent=115 // pred_check_branch
          %797 = sbr.rel (%p795) target = $region120
        $region119: #{smpl_forward.3} parent=115 // pred_region
          %s798 = sand.u32 %s128, 1
          %s799 = sand.u32 %s128, 1
          %s800 = smul.addr %s799, 16
          %s801 = scalar_lea.vmem [#allocation3], %s800
        $region120: #{smpl_forward.3} parent=115 // pred_fallthru
          _
      $region116: #{smpl_forward.3} parent=5 // pred_fallthru
        _
    $region6: #{smpl_forward.3} parent=1 // loop_footer
      %s14 = sadd.s32 1, %s10
    $region7: #{smpl_forward.3} parent=1 // loop_footer_branch
      %9 = sbr.rel target = $region3
    $region8: #{smpl_forward.3} parent=1 // loop_exit
      _

</llo_original>
